<compile_context>
chip_gen: v7x
topology: tpu7x:2x2x1
jax: 0.10.0
libtpu: 0.0.40
codegen_flags: <defaults>
</compile_context>

<pallas_src>
import functools

import jax
import jax.numpy as jnp
from jax.experimental import pallas as pl
from jax.experimental.pallas import tpu as pltpu

VMEM = pl.BlockSpec(memory_space=pltpu.MemorySpace.VMEM)


def _ceil_to(x, m):
    return ((x + m - 1) // m) * m


# ---------------------------------------------------------------------------
# Fused EF_model_AL forward kernel
#   acoustic branch : A_out = relu(A_feat @ W1 + b1)
#   lexical branch  : masked single-layer LSTM (final hidden) -> relu(fc1)
#   fusion head     : feat = relu(cat([A_out, L_out]) @ Wo1 + bo1)   (cat folded into split matmul)
#                     out  = feat @ Wo2 + bo2
# ---------------------------------------------------------------------------
def _ef_model_al_kernel(
    len_ref,        # [B, 1] f32    sequence lengths (mask2length)
    a_ref,          # [B, DIN_A]    acoustic features
    x_ref,          # [B*T, DIN_L]  lexical features, batch-major (row = b*T + t)
    w_ref,          # [RW, SLABW]   packed weight slab (all matmul RHS, zero padded)
    b_ref,          # [5, SLABW]    packed bias slab (one bias per row, zero padded)
    out_ref,        # [B, OUTW]     packed output: [feat | logits | zeros]
    gx_ref,         # VMEM scratch [B*T, 4*Hpad]: hoisted LSTM input projection
    *, B, T, din_a, out_dim_a, din_l, hpad, out_dim_v, fusion, num_class, outw, offs):
    f32 = jnp.float32
    gw = 4 * hpad

    def w(name, rows, cols):
        r = offs[name]                                # static row offset (multiple of 8)
        return w_ref[r:r + rows, 0:cols]

    def bias(row, cols):
        return b_ref[row:row + 1, 0:cols]             # [1, cols] f32, broadcasts over batch

    cdt = w_ref[0:8, 0:128].dtype                     # matmul operand dtype (f32 or bf16)

    # ---- acoustic branch ----------------------------------------------------
    a_out = jnp.maximum(
        jnp.dot(a_ref[...], w("fc_w1", din_a, out_dim_a),
                preferred_element_type=f32) + bias(0, out_dim_a), 0.0)      # [B, OUT_DIM_A]

    # ---- lexical branch: masked LSTM ---------------------------------------
    # Hoisted input projection for all timesteps (one matmul), parked in VMEM scratch so
    # only one [B, 4*Hpad] row group is live per unrolled recurrence step.
    gx_ref[...] = (jnp.dot(x_ref[...], w("wih", din_l, gw),
                           preferred_element_type=f32) + bias(1, gw))       # [B*T, 4*Hpad]
    # Compact Whh is [Hpad, 4*Hpad] (a few vregs) -- safe to keep live across the unroll.
    whh = w("whh", hpad, gw)
    len_v = len_ref[...]                                                    # [B, 1]

    h = jnp.zeros((B, hpad), f32)
    c = jnp.zeros((B, hpad), f32)
    for t in range(T):                       # static unroll: T is small & static
        # batch-major scratch -> the B rows of timestep t via a strided load (stride = T)
        gx_t = gx_ref[pl.ds(t, B, stride=T), :]                             # [B, 4*Hpad]
        gates = gx_t + jnp.dot(h.astype(cdt), whh, preferred_element_type=f32)
        sg = jax.nn.sigmoid(gates)                   # one full-vreg EUP pass
        i_g = sg[:, 0 * hpad:1 * hpad]               # torch gate order i, f, g, o
        f_g = sg[:, 1 * hpad:2 * hpad]               # static lane slices (XLU, off the MXU path)
        o_g = sg[:, 3 * hpad:4 * hpad]
        g_g = jnp.tanh(gates[:, 2 * hpad:3 * hpad])
        c_new = f_g * c + i_g * g_g
        h_new = o_g * jnp.tanh(c_new)
        # pack_padded_sequence "final hidden" semantics: freeze state once t >= length
        keep = len_v > float(t)                                             # [B, 1]
        c = jnp.where(keep, c_new, c)
        h = jnp.where(keep, h_new, h)

    # fc1 -> dropout(identity) -> relu
    l_out = jnp.maximum(
        jnp.dot(h.astype(cdt), w("wf1", hpad, out_dim_v),
                preferred_element_type=f32) + bias(2, out_dim_v), 0.0)      # [B, OUT_DIM_V]

    # ---- fusion head --------------------------------------------------------
    # TODO(synk): nn.Dropout is stochastic only in training; modeled as identity (eval mode).
    feat = jnp.maximum(
        jnp.dot(a_out.astype(cdt), w("w1a", out_dim_a, fusion), preferred_element_type=f32)
        + jnp.dot(l_out.astype(cdt), w("w1l", out_dim_v, fusion), preferred_element_type=f32)
        + bias(3, fusion), 0.0)                                             # [B, FUSION]
    logits = (jnp.dot(feat.astype(cdt), w("w2", fusion, num_class),
                      preferred_element_type=f32) + bias(4, num_class))     # [B, NUM_CLASS]

    # single lane-padded output slab: [feat | logits | zeros]; wrapper slices it apart.
    out_ref[...] = jnp.zeros((B, outw), f32)
    out_ref[:, 0:fusion] = feat
    out_ref[:, fusion:fusion + num_class] = logits


# ---------------------------------------------------------------------------
# Wrapper: full EF_model_AL forward (single pallas_call, no grid — everything fits VMEM)
# ---------------------------------------------------------------------------
def ef_model_al_forward(params, a_feat, l_feat, l_mask, *, meta):
    B, T, din_l = l_feat.shape
    fusion, num_class = meta["fusion"], meta["num_class"]
    hpad = meta["hpad"]
    gw = 4 * hpad
    outw = _ceil_to(fusion + num_class, 128)

    # mask2length without an HBM pass over the full [B,T,D] mask: accept a [B,T] mask
    # (or take feature-column 0 of a 3-D binary mask).
    m = l_mask if l_mask.ndim == 2 else l_mask[..., 0]
    lengths = jnp.sum((m > 0.5).astype(jnp.float32), axis=1, keepdims=True)     # [B, 1]

    cd = params["w_slab"].dtype          # matmul operand dtype (f32 default, bf16 optional)
    x = l_feat.reshape(B * T, din_l).astype(cd)   # batch-major: pure reshape, no transpose
    a = a_feat.astype(cd)

    kernel = functools.partial(
        _ef_model_al_kernel, B=B, T=T,
        din_a=meta["din_a"], out_dim_a=meta["out_dim_a"], din_l=din_l,
        hpad=hpad, out_dim_v=meta["out_dim_v"],
        fusion=fusion, num_class=num_class, outw=outw, offs=meta["offs"])

    # TODO(synk): for non-trivial B on v7x, add a batch grid (grid=(pl.cdiv(B, TB),),
    # dimension_semantics=("parallel",)) to use both TensorCores, and tile the hoisted
    # gates_x over T before it approaches v7x's 64 MiB VMEM.
    packed = pl.pallas_call(
        kernel,
        out_shape=jax.ShapeDtypeStruct((B, outw), jnp.float32),
        in_specs=[VMEM] * 5,
        out_specs=VMEM,
        scratch_shapes=[pltpu.VMEM((B * T, gw), jnp.float32)],
    )(lengths, a, x, params["w_slab"], params["b_slab"])

    feat = packed[:, :fusion]
    out = packed[:, fusion:fusion + num_class]
    return out, feat


# ---------------------------------------------------------------------------
# Parameter init (natural PyTorch-like layouts)
# ---------------------------------------------------------------------------
def init_params(key, din_a, out_dim_a, din_l, hidden, out_dim_v, fusion_size, num_class):
    ks = jax.random.split(key, 12)
    s = 0.1
    # Per-branch logits heads (fc Wc/bc, lstm Wf2/bf2) are omitted — EF_model_AL only
    # consumes the branch features, so those matmuls would be dead work inside the kernel.
    return {
        "fc_w1": s * jax.random.normal(ks[0], (din_a, out_dim_a), jnp.float32),
        "fc_b1": s * jax.random.normal(ks[1], (1, out_dim_a), jnp.float32),
        # torch gate order i, f, g, o; lstm_b == b_ih + b_hh
        "lstm_wih": s * jax.random.normal(ks[2], (din_l, 4 * hidden), jnp.float32),
        "lstm_whh": s * jax.random.normal(ks[3], (hidden, 4 * hidden), jnp.float32),
        "lstm_b":   s * jax.random.normal(ks[4], (1, 4 * hidden), jnp.float32),
        "lstm_wf1": s * jax.random.normal(ks[5], (hidden, out_dim_v), jnp.float32),
        "lstm_bf1": s * jax.random.normal(ks[6], (1, out_dim_v), jnp.float32),
        "out1_w_a": s * jax.random.normal(ks[7], (out_dim_a, fusion_size), jnp.float32),
        "out1_w_l": s * jax.random.normal(ks[8], (out_dim_v, fusion_size), jnp.float32),
        "out1_b":   s * jax.random.normal(ks[9], (1, fusion_size), jnp.float32),
        "out2_w":   s * jax.random.normal(ks[10], (fusion_size, num_class), jnp.float32),
        "out2_b":   s * jax.random.normal(ks[11], (1, num_class), jnp.float32),
    }


# ---------------------------------------------------------------------------
# One-time host-side layout prep:
#   * compact LSTM gate padding (H -> Hpad, 4*Hpad lanes total, Hpad multiple of 32)
#   * all matmul RHS row-stacked (8-row aligned, zero padded to a common lane width)
#     into ONE weight slab; all biases into ONE bias slab
#   -> DMA prologue drops from 15 descriptors to 5.
# Zero padding keeps padded hidden lanes exactly zero through the whole recurrence,
# so results are unchanged.
# ---------------------------------------------------------------------------
def prepare_params(p, *, din_a, out_dim_a, din_l, hidden, out_dim_v, fusion, num_class,
                   matmul_dtype=jnp.float32):
    H = hidden
    hpad = _ceil_to(max(H, 1), 32)            # 4*hpad is a multiple of 128 lanes
    gw = 4 * hpad

    def pad_gates(wmat):                      # [in, 4H] -> [in, 4*hpad]
        w4 = wmat.reshape(wmat.shape[0], 4, H)
        return jnp.pad(w4, ((0, 0), (0, 0), (0, hpad - H))).reshape(wmat.shape[0], gw)

    wih_c = pad_gates(p["lstm_wih"])                                      # [din_l, gw]
    whh_c = jnp.pad(pad_gates(p["lstm_whh"]), ((0, hpad - H), (0, 0)))    # [hpad, gw]
    b_c = pad_gates(p["lstm_b"])                                          # [1, gw]
    wf1_c = jnp.pad(p["lstm_wf1"], ((0, hpad - H), (0, 0)))               # [hpad, out_dim_v]

    slab_w = max(gw, out_dim_a, out_dim_v, fusion, num_class, 128)
    mats = [("fc_w1", p["fc_w1"]), ("whh", whh_c), ("wih", wih_c), ("wf1", wf1_c),
            ("w1a", p["out1_w_a"]), ("w1l", p["out1_w_l"]), ("w2", p["out2_w"])]
    blocks, offs, r = [], {}, 0
    for name, mmat in mats:
        rows8 = _ceil_to(mmat.shape[0], 8)    # keep every in-kernel row slice 8-aligned
        blk = jnp.zeros((rows8, slab_w), jnp.float32)
        blk = blk.at[:mmat.shape[0], :mmat.shape[1]].set(mmat)
        blocks.append(blk)
        offs[name] = r
        r += rows8
    w_slab = jnp.concatenate(blocks, axis=0).astype(matmul_dtype)

    biases = [p["fc_b1"], b_c, p["lstm_bf1"], p["out1_b"], p["out2_b"]]
    b_slab = jnp.zeros((len(biases), slab_w), jnp.float32)
    for i, b in enumerate(biases):
        b_slab = b_slab.at[i, :b.shape[1]].set(b[0])   # biases stay f32 (post-MXU adds)

    params = {"w_slab": w_slab, "b_slab": b_slab}
    meta = dict(din_a=din_a, out_dim_a=out_dim_a, din_l=din_l, hidden=H, hpad=hpad,
                out_dim_v=out_dim_v, fusion=fusion, num_class=num_class, offs=offs)
    return params, meta


# ---------------------------------------------------------------------------
# Example run
# ---------------------------------------------------------------------------
if __name__ == "__main__":
    B, T = 2, 8          # NOTE: B>=8 (multiple of 8) amortizes launch/DMA cost on real workloads
    DIN_A, OUT_DIM_A = 32, 16
    DIN_L, HIDDEN, OUT_DIM_V = 24, 16, 16
    FUSION_SIZE, NUM_CLASS = 32, 4

    key = jax.random.PRNGKey(0)
    k_p, k_a, k_l = jax.random.split(key, 3)

    raw = init_params(k_p, DIN_A, OUT_DIM_A, DIN_L, HIDDEN, OUT_DIM_V, FUSION_SIZE, NUM_CLASS)
    # TODO(synk): pass matmul_dtype=jnp.bfloat16 on v6e/v7x to halve weight DMA bytes and
    # double MXU operand throughput; gate/state elementwise math stays f32 inside the kernel.
    params, meta = prepare_params(
        raw, din_a=DIN_A, out_dim_a=OUT_DIM_A, din_l=DIN_L, hidden=HIDDEN,
        out_dim_v=OUT_DIM_V, fusion=FUSION_SIZE, num_class=NUM_CLASS,
        matmul_dtype=jnp.float32)

    A_feat = jax.random.normal(k_a, (B, DIN_A), jnp.float32)
    L_feat = jax.random.normal(k_l, (B, T, DIN_L), jnp.float32)
    lengths = jnp.array([8, 5], jnp.int32)
    L_mask = (jnp.arange(T)[None, :] < lengths[:, None]).astype(jnp.float32)   # [B, T]

    fwd = jax.jit(functools.partial(ef_model_al_forward, meta=meta))
    out, feat = fwd(params, A_feat, L_feat, L_mask)
    jax.block_until_ready((out, feat))

    assert out.shape == (B, NUM_CLASS) and feat.shape == (B, FUSION_SIZE)
    print("KERNEL_OK")
</pallas_src>

<mosaic_0001>
module attributes {stable_mosaic.version = 11 : i64} {
  func.func @_ef_model_al_kernel(%arg0: memref<2x1xf32, #tpu.memory_space<vmem>>, %arg1: memref<2x32xf32, #tpu.memory_space<vmem>>, %arg2: memref<16x24xf32, #tpu.memory_space<vmem>>, %arg3: memref<184x128xf32, #tpu.memory_space<vmem>>, %arg4: memref<5x128xf32, #tpu.memory_space<vmem>>, %arg5: memref<2x128xf32, #tpu.memory_space<vmem>>, %arg6: memref<16x128xf32, #tpu.memory_space<vmem>>) attributes {dimension_semantics = [], scalar_prefetch = 0 : i64, scratch_operands = 1 : i64, tpu.core_type = #tpu.core_type<tc>} {
    %c0 = arith.constant 0 : index
    %c0_0 = arith.constant 0 : index
    %0 = vector.load %arg1[%c0, %c0_0] : memref<2x32xf32, #tpu.memory_space<vmem>>, vector<2x32xf32>
    %c0_1 = arith.constant 0 : index
    %c0_2 = arith.constant 0 : index
    %1 = vector.load %arg3[%c0_1, %c0_2] : memref<184x128xf32, #tpu.memory_space<vmem>>, vector<32x16xf32>
    %cst = arith.constant dense<0.000000e+00> : vector<2x16xf32>
    %2 = tpu.matmul %0, %1, %cst {dimension_numbers = #tpu.dot_dimension_numbers<[1], [0], [0], [1], [0, 0, 1, 1], [], []>} : vector<2x32xf32>, vector<32x16xf32>, vector<2x16xf32> -> vector<2x16xf32>
    %c0_3 = arith.constant 0 : index
    %c0_4 = arith.constant 0 : index
    %3 = vector.load %arg4[%c0_3, %c0_4] : memref<5x128xf32, #tpu.memory_space<vmem>>, vector<1x16xf32>
    %4 = vector.broadcast %3 : vector<1x16xf32> to vector<2x16xf32>
    %5 = arith.addf %2, %4 : vector<2x16xf32>
    %cst_5 = arith.constant 0.000000e+00 : f32
    %6 = vector.broadcast %cst_5 : f32 to vector<2x16xf32>
    %7 = arith.maximumf %5, %6 : vector<2x16xf32>
    %c0_6 = arith.constant 0 : index
    %c0_7 = arith.constant 0 : index
    %8 = vector.load %arg2[%c0_6, %c0_7] : memref<16x24xf32, #tpu.memory_space<vmem>>, vector<16x24xf32>
    %c64 = arith.constant 64 : index
    %c0_8 = arith.constant 0 : index
    %9 = vector.load %arg3[%c64, %c0_8] : memref<184x128xf32, #tpu.memory_space<vmem>>, vector<24x128xf32>
    %cst_9 = arith.constant dense<0.000000e+00> : vector<16x128xf32>
    %10 = tpu.matmul %8, %9, %cst_9 {dimension_numbers = #tpu.dot_dimension_numbers<[1], [0], [0], [1], [0, 0, 1, 1], [], []>} : vector<16x24xf32>, vector<24x128xf32>, vector<16x128xf32> -> vector<16x128xf32>
    %c1 = arith.constant 1 : index
    %c0_10 = arith.constant 0 : index
    %11 = vector.load %arg4[%c1, %c0_10] : memref<5x128xf32, #tpu.memory_space<vmem>>, vector<1x128xf32>
    %12 = vector.broadcast %11 : vector<1x128xf32> to vector<16x128xf32>
    %13 = arith.addf %10, %12 : vector<16x128xf32>
    %c0_11 = arith.constant 0 : index
    %c0_12 = arith.constant 0 : index
    %14 = vector.load %arg6[%c0_11, %c0_12] : memref<16x128xf32, #tpu.memory_space<vmem>>, vector<16x128xf32>
    tpu.vector_store %arg6[%c0_11, %c0_12], %13 {strides = array<i32>} : memref<16x128xf32, #tpu.memory_space<vmem>>, vector<16x128xf32>,
    %c32 = arith.constant 32 : index
    %c0_13 = arith.constant 0 : index
    %15 = vector.load %arg3[%c32, %c0_13] : memref<184x128xf32, #tpu.memory_space<vmem>>, vector<32x128xf32>
    %c0_14 = arith.constant 0 : index
    %c0_15 = arith.constant 0 : index
    %16 = vector.load %arg0[%c0_14, %c0_15] : memref<2x1xf32, #tpu.memory_space<vmem>>, vector<2x1xf32>
    %cst_16 = arith.constant 0.000000e+00 : f32
    %17 = vector.broadcast %cst_16 : f32 to vector<2x32xf32>
    %cst_17 = arith.constant 0.000000e+00 : f32
    %18 = vector.broadcast %cst_17 : f32 to vector<2x32xf32>
    %c0_18 = arith.constant 0 : index
    %c0_19 = arith.constant 0 : index
    %19 = tpu.strided_load %arg6[%c0_18, %c0_19] {strides = array<i32: 8, 1>} : memref<16x128xf32, #tpu.memory_space<vmem>>, vector<2x128xf32>
    %cst_20 = arith.constant dense<0.000000e+00> : vector<2x128xf32>
    %20 = tpu.matmul %17, %15, %cst_20 {dimension_numbers = #tpu.dot_dimension_numbers<[1], [0], [0], [1], [0, 0, 1, 1], [], []>} : vector<2x32xf32>, vector<32x128xf32>, vector<2x128xf32> -> vector<2x128xf32>
    %21 = arith.addf %19, %20 : vector<2x128xf32>
    %22 = arith.negf %21 : vector<2x128xf32>
    %23 = math.exp %22 : vector<2x128xf32>
    %cst_21 = arith.constant 1.000000e+00 : f32
    %24 = vector.broadcast %cst_21 : f32 to vector<2x128xf32>
    %25 = arith.addf %24, %23 : vector<2x128xf32>
    %26 = arith.divf %24, %25 : vector<2x128xf32>
    %27 = vector.extract_strided_slice %26 {offsets = [0, 0], sizes = [2, 32], strides = [1, 1]} : vector<2x128xf32> to vector<2x32xf32>
    %28 = vector.extract_strided_slice %26 {offsets = [0, 32], sizes = [2, 32], strides = [1, 1]} : vector<2x128xf32> to vector<2x32xf32>
    %29 = vector.extract_strided_slice %26 {offsets = [0, 96], sizes = [2, 32], strides = [1, 1]} : vector<2x128xf32> to vector<2x32xf32>
    %30 = vector.extract_strided_slice %21 {offsets = [0, 64], sizes = [2, 32], strides = [1, 1]} : vector<2x128xf32> to vector<2x32xf32>
    %31 = math.tanh %30 : vector<2x32xf32>
    %32 = arith.mulf %28, %18 : vector<2x32xf32>
    %33 = arith.mulf %27, %31 : vector<2x32xf32>
    %34 = arith.addf %32, %33 : vector<2x32xf32>
    %35 = math.tanh %34 : vector<2x32xf32>
    %36 = arith.mulf %29, %35 : vector<2x32xf32>
    %cst_22 = arith.constant 0.000000e+00 : f32
    %37 = vector.broadcast %cst_22 : f32 to vector<2x1xf32>
    %38 = arith.cmpf ogt, %16, %37 : vector<2x1xf32>
    %39 = vector.shape_cast %38 : vector<2x1xi1> to vector<2x1xi1>
    %40 = vector.broadcast %39 : vector<2x1xi1> to vector<2x32xi1>
    %41 = arith.select %40, %34, %18 : vector<2x32xi1>, vector<2x32xf32>
    %42 = vector.shape_cast %38 : vector<2x1xi1> to vector<2x1xi1>
    %43 = vector.broadcast %42 : vector<2x1xi1> to vector<2x32xi1>
    %44 = arith.select %43, %36, %17 : vector<2x32xi1>, vector<2x32xf32>
    %c1_23 = arith.constant 1 : index
    %c0_24 = arith.constant 0 : index
    %45 = tpu.strided_load %arg6[%c1_23, %c0_24] {strides = array<i32: 8, 1>} : memref<16x128xf32, #tpu.memory_space<vmem>>, vector<2x128xf32>
    %cst_25 = arith.constant dense<0.000000e+00> : vector<2x128xf32>
    %46 = tpu.matmul %44, %15, %cst_25 {dimension_numbers = #tpu.dot_dimension_numbers<[1], [0], [0], [1], [0, 0, 1, 1], [], []>} : vector<2x32xf32>, vector<32x128xf32>, vector<2x128xf32> -> vector<2x128xf32>
    %47 = arith.addf %45, %46 : vector<2x128xf32>
    %48 = arith.negf %47 : vector<2x128xf32>
    %49 = math.exp %48 : vector<2x128xf32>
    %cst_26 = arith.constant 1.000000e+00 : f32
    %50 = vector.broadcast %cst_26 : f32 to vector<2x128xf32>
    %51 = arith.addf %50, %49 : vector<2x128xf32>
    %52 = arith.divf %50, %51 : vector<2x128xf32>
    %53 = vector.extract_strided_slice %52 {offsets = [0, 0], sizes = [2, 32], strides = [1, 1]} : vector<2x128xf32> to vector<2x32xf32>
    %54 = vector.extract_strided_slice %52 {offsets = [0, 32], sizes = [2, 32], strides = [1, 1]} : vector<2x128xf32> to vector<2x32xf32>
    %55 = vector.extract_strided_slice %52 {offsets = [0, 96], sizes = [2, 32], strides = [1, 1]} : vector<2x128xf32> to vector<2x32xf32>
    %56 = vector.extract_strided_slice %47 {offsets = [0, 64], sizes = [2, 32], strides = [1, 1]} : vector<2x128xf32> to vector<2x32xf32>
    %57 = math.tanh %56 : vector<2x32xf32>
    %58 = arith.mulf %54, %41 : vector<2x32xf32>
    %59 = arith.mulf %53, %57 : vector<2x32xf32>
    %60 = arith.addf %58, %59 : vector<2x32xf32>
    %61 = math.tanh %60 : vector<2x32xf32>
    %62 = arith.mulf %55, %61 : vector<2x32xf32>
    %cst_27 = arith.constant 1.000000e+00 : f32
    %63 = vector.broadcast %cst_27 : f32 to vector<2x1xf32>
    %64 = arith.cmpf ogt, %16, %63 : vector<2x1xf32>
    %65 = vector.shape_cast %64 : vector<2x1xi1> to vector<2x1xi1>
    %66 = vector.broadcast %65 : vector<2x1xi1> to vector<2x32xi1>
    %67 = arith.select %66, %60, %41 : vector<2x32xi1>, vector<2x32xf32>
    %68 = vector.shape_cast %64 : vector<2x1xi1> to vector<2x1xi1>
    %69 = vector.broadcast %68 : vector<2x1xi1> to vector<2x32xi1>
    %70 = arith.select %69, %62, %44 : vector<2x32xi1>, vector<2x32xf32>
    %c2 = arith.constant 2 : index
    %c0_28 = arith.constant 0 : index
    %71 = tpu.strided_load %arg6[%c2, %c0_28] {strides = array<i32: 8, 1>} : memref<16x128xf32, #tpu.memory_space<vmem>>, vector<2x128xf32>
    %cst_29 = arith.constant dense<0.000000e+00> : vector<2x128xf32>
    %72 = tpu.matmul %70, %15, %cst_29 {dimension_numbers = #tpu.dot_dimension_numbers<[1], [0], [0], [1], [0, 0, 1, 1], [], []>} : vector<2x32xf32>, vector<32x128xf32>, vector<2x128xf32> -> vector<2x128xf32>
    %73 = arith.addf %71, %72 : vector<2x128xf32>
    %74 = arith.negf %73 : vector<2x128xf32>
    %75 = math.exp %74 : vector<2x128xf32>
    %cst_30 = arith.constant 1.000000e+00 : f32
    %76 = vector.broadcast %cst_30 : f32 to vector<2x128xf32>
    %77 = arith.addf %76, %75 : vector<2x128xf32>
    %78 = arith.divf %76, %77 : vector<2x128xf32>
    %79 = vector.extract_strided_slice %78 {offsets = [0, 0], sizes = [2, 32], strides = [1, 1]} : vector<2x128xf32> to vector<2x32xf32>
    %80 = vector.extract_strided_slice %78 {offsets = [0, 32], sizes = [2, 32], strides = [1, 1]} : vector<2x128xf32> to vector<2x32xf32>
    %81 = vector.extract_strided_slice %78 {offsets = [0, 96], sizes = [2, 32], strides = [1, 1]} : vector<2x128xf32> to vector<2x32xf32>
    %82 = vector.extract_strided_slice %73 {offsets = [0, 64], sizes = [2, 32], strides = [1, 1]} : vector<2x128xf32> to vector<2x32xf32>
    %83 = math.tanh %82 : vector<2x32xf32>
    %84 = arith.mulf %80, %67 : vector<2x32xf32>
    %85 = arith.mulf %79, %83 : vector<2x32xf32>
    %86 = arith.addf %84, %85 : vector<2x32xf32>
    %87 = math.tanh %86 : vector<2x32xf32>
    %88 = arith.mulf %81, %87 : vector<2x32xf32>
    %cst_31 = arith.constant 2.000000e+00 : f32
    %89 = vector.broadcast %cst_31 : f32 to vector<2x1xf32>
    %90 = arith.cmpf ogt, %16, %89 : vector<2x1xf32>
    %91 = vector.shape_cast %90 : vector<2x1xi1> to vector<2x1xi1>
    %92 = vector.broadcast %91 : vector<2x1xi1> to vector<2x32xi1>
    %93 = arith.select %92, %86, %67 : vector<2x32xi1>, vector<2x32xf32>
    %94 = vector.shape_cast %90 : vector<2x1xi1> to vector<2x1xi1>
    %95 = vector.broadcast %94 : vector<2x1xi1> to vector<2x32xi1>
    %96 = arith.select %95, %88, %70 : vector<2x32xi1>, vector<2x32xf32>
    %c3 = arith.constant 3 : index
    %c0_32 = arith.constant 0 : index
    %97 = tpu.strided_load %arg6[%c3, %c0_32] {strides = array<i32: 8, 1>} : memref<16x128xf32, #tpu.memory_space<vmem>>, vector<2x128xf32>
    %cst_33 = arith.constant dense<0.000000e+00> : vector<2x128xf32>
    %98 = tpu.matmul %96, %15, %cst_33 {dimension_numbers = #tpu.dot_dimension_numbers<[1], [0], [0], [1], [0, 0, 1, 1], [], []>} : vector<2x32xf32>, vector<32x128xf32>, vector<2x128xf32> -> vector<2x128xf32>
    %99 = arith.addf %97, %98 : vector<2x128xf32>
    %100 = arith.negf %99 : vector<2x128xf32>
    %101 = math.exp %100 : vector<2x128xf32>
    %cst_34 = arith.constant 1.000000e+00 : f32
    %102 = vector.broadcast %cst_34 : f32 to vector<2x128xf32>
    %103 = arith.addf %102, %101 : vector<2x128xf32>
    %104 = arith.divf %102, %103 : vector<2x128xf32>
    %105 = vector.extract_strided_slice %104 {offsets = [0, 0], sizes = [2, 32], strides = [1, 1]} : vector<2x128xf32> to vector<2x32xf32>
    %106 = vector.extract_strided_slice %104 {offsets = [0, 32], sizes = [2, 32], strides = [1, 1]} : vector<2x128xf32> to vector<2x32xf32>
    %107 = vector.extract_strided_slice %104 {offsets = [0, 96], sizes = [2, 32], strides = [1, 1]} : vector<2x128xf32> to vector<2x32xf32>
    %108 = vector.extract_strided_slice %99 {offsets = [0, 64], sizes = [2, 32], strides = [1, 1]} : vector<2x128xf32> to vector<2x32xf32>
    %109 = math.tanh %108 : vector<2x32xf32>
    %110 = arith.mulf %106, %93 : vector<2x32xf32>
    %111 = arith.mulf %105, %109 : vector<2x32xf32>
    %112 = arith.addf %110, %111 : vector<2x32xf32>
    %113 = math.tanh %112 : vector<2x32xf32>
    %114 = arith.mulf %107, %113 : vector<2x32xf32>
    %cst_35 = arith.constant 3.000000e+00 : f32
    %115 = vector.broadcast %cst_35 : f32 to vector<2x1xf32>
    %116 = arith.cmpf ogt, %16, %115 : vector<2x1xf32>
    %117 = vector.shape_cast %116 : vector<2x1xi1> to vector<2x1xi1>
    %118 = vector.broadcast %117 : vector<2x1xi1> to vector<2x32xi1>
    %119 = arith.select %118, %112, %93 : vector<2x32xi1>, vector<2x32xf32>
    %120 = vector.shape_cast %116 : vector<2x1xi1> to vector<2x1xi1>
    %121 = vector.broadcast %120 : vector<2x1xi1> to vector<2x32xi1>
    %122 = arith.select %121, %114, %96 : vector<2x32xi1>, vector<2x32xf32>
    %c4 = arith.constant 4 : index
    %c0_36 = arith.constant 0 : index
    %123 = tpu.strided_load %arg6[%c4, %c0_36] {strides = array<i32: 8, 1>} : memref<16x128xf32, #tpu.memory_space<vmem>>, vector<2x128xf32>
    %cst_37 = arith.constant dense<0.000000e+00> : vector<2x128xf32>
    %124 = tpu.matmul %122, %15, %cst_37 {dimension_numbers = #tpu.dot_dimension_numbers<[1], [0], [0], [1], [0, 0, 1, 1], [], []>} : vector<2x32xf32>, vector<32x128xf32>, vector<2x128xf32> -> vector<2x128xf32>
    %125 = arith.addf %123, %124 : vector<2x128xf32>
    %126 = arith.negf %125 : vector<2x128xf32>
    %127 = math.exp %126 : vector<2x128xf32>
    %cst_38 = arith.constant 1.000000e+00 : f32
    %128 = vector.broadcast %cst_38 : f32 to vector<2x128xf32>
    %129 = arith.addf %128, %127 : vector<2x128xf32>
    %130 = arith.divf %128, %129 : vector<2x128xf32>
    %131 = vector.extract_strided_slice %130 {offsets = [0, 0], sizes = [2, 32], strides = [1, 1]} : vector<2x128xf32> to vector<2x32xf32>
    %132 = vector.extract_strided_slice %130 {offsets = [0, 32], sizes = [2, 32], strides = [1, 1]} : vector<2x128xf32> to vector<2x32xf32>
    %133 = vector.extract_strided_slice %130 {offsets = [0, 96], sizes = [2, 32], strides = [1, 1]} : vector<2x128xf32> to vector<2x32xf32>
    %134 = vector.extract_strided_slice %125 {offsets = [0, 64], sizes = [2, 32], strides = [1, 1]} : vector<2x128xf32> to vector<2x32xf32>
    %135 = math.tanh %134 : vector<2x32xf32>
    %136 = arith.mulf %132, %119 : vector<2x32xf32>
    %137 = arith.mulf %131, %135 : vector<2x32xf32>
    %138 = arith.addf %136, %137 : vector<2x32xf32>
    %139 = math.tanh %138 : vector<2x32xf32>
    %140 = arith.mulf %133, %139 : vector<2x32xf32>
    %cst_39 = arith.constant 4.000000e+00 : f32
    %141 = vector.broadcast %cst_39 : f32 to vector<2x1xf32>
    %142 = arith.cmpf ogt, %16, %141 : vector<2x1xf32>
    %143 = vector.shape_cast %142 : vector<2x1xi1> to vector<2x1xi1>
    %144 = vector.broadcast %143 : vector<2x1xi1> to vector<2x32xi1>
    %145 = arith.select %144, %138, %119 : vector<2x32xi1>, vector<2x32xf32>
    %146 = vector.shape_cast %142 : vector<2x1xi1> to vector<2x1xi1>
    %147 = vector.broadcast %146 : vector<2x1xi1> to vector<2x32xi1>
    %148 = arith.select %147, %140, %122 : vector<2x32xi1>, vector<2x32xf32>
    %c5 = arith.constant 5 : index
    %c0_40 = arith.constant 0 : index
    %149 = tpu.strided_load %arg6[%c5, %c0_40] {strides = array<i32: 8, 1>} : memref<16x128xf32, #tpu.memory_space<vmem>>, vector<2x128xf32>
    %cst_41 = arith.constant dense<0.000000e+00> : vector<2x128xf32>
    %150 = tpu.matmul %148, %15, %cst_41 {dimension_numbers = #tpu.dot_dimension_numbers<[1], [0], [0], [1], [0, 0, 1, 1], [], []>} : vector<2x32xf32>, vector<32x128xf32>, vector<2x128xf32> -> vector<2x128xf32>
    %151 = arith.addf %149, %150 : vector<2x128xf32>
    %152 = arith.negf %151 : vector<2x128xf32>
    %153 = math.exp %152 : vector<2x128xf32>
    %cst_42 = arith.constant 1.000000e+00 : f32
    %154 = vector.broadcast %cst_42 : f32 to vector<2x128xf32>
    %155 = arith.addf %154, %153 : vector<2x128xf32>
    %156 = arith.divf %154, %155 : vector<2x128xf32>
    %157 = vector.extract_strided_slice %156 {offsets = [0, 0], sizes = [2, 32], strides = [1, 1]} : vector<2x128xf32> to vector<2x32xf32>
    %158 = vector.extract_strided_slice %156 {offsets = [0, 32], sizes = [2, 32], strides = [1, 1]} : vector<2x128xf32> to vector<2x32xf32>
    %159 = vector.extract_strided_slice %156 {offsets = [0, 96], sizes = [2, 32], strides = [1, 1]} : vector<2x128xf32> to vector<2x32xf32>
    %160 = vector.extract_strided_slice %151 {offsets = [0, 64], sizes = [2, 32], strides = [1, 1]} : vector<2x128xf32> to vector<2x32xf32>
    %161 = math.tanh %160 : vector<2x32xf32>
    %162 = arith.mulf %158, %145 : vector<2x32xf32>
    %163 = arith.mulf %157, %161 : vector<2x32xf32>
    %164 = arith.addf %162, %163 : vector<2x32xf32>
    %165 = math.tanh %164 : vector<2x32xf32>
    %166 = arith.mulf %159, %165 : vector<2x32xf32>
    %cst_43 = arith.constant 5.000000e+00 : f32
    %167 = vector.broadcast %cst_43 : f32 to vector<2x1xf32>
    %168 = arith.cmpf ogt, %16, %167 : vector<2x1xf32>
    %169 = vector.shape_cast %168 : vector<2x1xi1> to vector<2x1xi1>
    %170 = vector.broadcast %169 : vector<2x1xi1> to vector<2x32xi1>
    %171 = arith.select %170, %164, %145 : vector<2x32xi1>, vector<2x32xf32>
    %172 = vector.shape_cast %168 : vector<2x1xi1> to vector<2x1xi1>
    %173 = vector.broadcast %172 : vector<2x1xi1> to vector<2x32xi1>
    %174 = arith.select %173, %166, %148 : vector<2x32xi1>, vector<2x32xf32>
    %c6 = arith.constant 6 : index
    %c0_44 = arith.constant 0 : index
    %175 = tpu.strided_load %arg6[%c6, %c0_44] {strides = array<i32: 8, 1>} : memref<16x128xf32, #tpu.memory_space<vmem>>, vector<2x128xf32>
    %cst_45 = arith.constant dense<0.000000e+00> : vector<2x128xf32>
    %176 = tpu.matmul %174, %15, %cst_45 {dimension_numbers = #tpu.dot_dimension_numbers<[1], [0], [0], [1], [0, 0, 1, 1], [], []>} : vector<2x32xf32>, vector<32x128xf32>, vector<2x128xf32> -> vector<2x128xf32>
    %177 = arith.addf %175, %176 : vector<2x128xf32>
    %178 = arith.negf %177 : vector<2x128xf32>
    %179 = math.exp %178 : vector<2x128xf32>
    %cst_46 = arith.constant 1.000000e+00 : f32
    %180 = vector.broadcast %cst_46 : f32 to vector<2x128xf32>
    %181 = arith.addf %180, %179 : vector<2x128xf32>
    %182 = arith.divf %180, %181 : vector<2x128xf32>
    %183 = vector.extract_strided_slice %182 {offsets = [0, 0], sizes = [2, 32], strides = [1, 1]} : vector<2x128xf32> to vector<2x32xf32>
    %184 = vector.extract_strided_slice %182 {offsets = [0, 32], sizes = [2, 32], strides = [1, 1]} : vector<2x128xf32> to vector<2x32xf32>
    %185 = vector.extract_strided_slice %182 {offsets = [0, 96], sizes = [2, 32], strides = [1, 1]} : vector<2x128xf32> to vector<2x32xf32>
    %186 = vector.extract_strided_slice %177 {offsets = [0, 64], sizes = [2, 32], strides = [1, 1]} : vector<2x128xf32> to vector<2x32xf32>
    %187 = math.tanh %186 : vector<2x32xf32>
    %188 = arith.mulf %184, %171 : vector<2x32xf32>
    %189 = arith.mulf %183, %187 : vector<2x32xf32>
    %190 = arith.addf %188, %189 : vector<2x32xf32>
    %191 = math.tanh %190 : vector<2x32xf32>
    %192 = arith.mulf %185, %191 : vector<2x32xf32>
    %cst_47 = arith.constant 6.000000e+00 : f32
    %193 = vector.broadcast %cst_47 : f32 to vector<2x1xf32>
    %194 = arith.cmpf ogt, %16, %193 : vector<2x1xf32>
    %195 = vector.shape_cast %194 : vector<2x1xi1> to vector<2x1xi1>
    %196 = vector.broadcast %195 : vector<2x1xi1> to vector<2x32xi1>
    %197 = arith.select %196, %190, %171 : vector<2x32xi1>, vector<2x32xf32>
    %198 = vector.shape_cast %194 : vector<2x1xi1> to vector<2x1xi1>
    %199 = vector.broadcast %198 : vector<2x1xi1> to vector<2x32xi1>
    %200 = arith.select %199, %192, %174 : vector<2x32xi1>, vector<2x32xf32>
    %c7 = arith.constant 7 : index
    %c0_48 = arith.constant 0 : index
    %201 = tpu.strided_load %arg6[%c7, %c0_48] {strides = array<i32: 8, 1>} : memref<16x128xf32, #tpu.memory_space<vmem>>, vector<2x128xf32>
    %cst_49 = arith.constant dense<0.000000e+00> : vector<2x128xf32>
    %202 = tpu.matmul %200, %15, %cst_49 {dimension_numbers = #tpu.dot_dimension_numbers<[1], [0], [0], [1], [0, 0, 1, 1], [], []>} : vector<2x32xf32>, vector<32x128xf32>, vector<2x128xf32> -> vector<2x128xf32>
    %203 = arith.addf %201, %202 : vector<2x128xf32>
    %204 = arith.negf %203 : vector<2x128xf32>
    %205 = math.exp %204 : vector<2x128xf32>
    %cst_50 = arith.constant 1.000000e+00 : f32
    %206 = vector.broadcast %cst_50 : f32 to vector<2x128xf32>
    %207 = arith.addf %206, %205 : vector<2x128xf32>
    %208 = arith.divf %206, %207 : vector<2x128xf32>
    %209 = vector.extract_strided_slice %208 {offsets = [0, 0], sizes = [2, 32], strides = [1, 1]} : vector<2x128xf32> to vector<2x32xf32>
    %210 = vector.extract_strided_slice %208 {offsets = [0, 32], sizes = [2, 32], strides = [1, 1]} : vector<2x128xf32> to vector<2x32xf32>
    %211 = vector.extract_strided_slice %208 {offsets = [0, 96], sizes = [2, 32], strides = [1, 1]} : vector<2x128xf32> to vector<2x32xf32>
    %212 = vector.extract_strided_slice %203 {offsets = [0, 64], sizes = [2, 32], strides = [1, 1]} : vector<2x128xf32> to vector<2x32xf32>
    %213 = math.tanh %212 : vector<2x32xf32>
    %214 = arith.mulf %210, %197 : vector<2x32xf32>
    %215 = arith.mulf %209, %213 : vector<2x32xf32>
    %216 = arith.addf %214, %215 : vector<2x32xf32>
    %217 = math.tanh %216 : vector<2x32xf32>
    %218 = arith.mulf %211, %217 : vector<2x32xf32>
    %cst_51 = arith.constant 7.000000e+00 : f32
    %219 = vector.broadcast %cst_51 : f32 to vector<2x1xf32>
    %220 = arith.cmpf ogt, %16, %219 : vector<2x1xf32>
    %221 = vector.shape_cast %220 : vector<2x1xi1> to vector<2x1xi1>
    %222 = vector.broadcast %221 : vector<2x1xi1> to vector<2x32xi1>
    %223 = arith.select %222, %218, %200 : vector<2x32xi1>, vector<2x32xf32>
    %c88 = arith.constant 88 : index
    %c0_52 = arith.constant 0 : index
    %224 = vector.load %arg3[%c88, %c0_52] : memref<184x128xf32, #tpu.memory_space<vmem>>, vector<32x16xf32>
    %cst_53 = arith.constant dense<0.000000e+00> : vector<2x16xf32>
    %225 = tpu.matmul %223, %224, %cst_53 {dimension_numbers = #tpu.dot_dimension_numbers<[1], [0], [0], [1], [0, 0, 1, 1], [], []>} : vector<2x32xf32>, vector<32x16xf32>, vector<2x16xf32> -> vector<2x16xf32>
    %c2_54 = arith.constant 2 : index
    %c0_55 = arith.constant 0 : index
    %226 = vector.load %arg4[%c2_54, %c0_55] : memref<5x128xf32, #tpu.memory_space<vmem>>, vector<1x16xf32>
    %227 = vector.broadcast %226 : vector<1x16xf32> to vector<2x16xf32>
    %228 = arith.addf %225, %227 : vector<2x16xf32>
    %cst_56 = arith.constant 0.000000e+00 : f32
    %229 = vector.broadcast %cst_56 : f32 to vector<2x16xf32>
    %230 = arith.maximumf %228, %229 : vector<2x16xf32>
    %c120 = arith.constant 120 : index
    %c0_57 = arith.constant 0 : index
    %231 = vector.load %arg3[%c120, %c0_57] : memref<184x128xf32, #tpu.memory_space<vmem>>, vector<16x32xf32>
    %cst_58 = arith.constant dense<0.000000e+00> : vector<2x32xf32>
    %232 = tpu.matmul %7, %231, %cst_58 {dimension_numbers = #tpu.dot_dimension_numbers<[1], [0], [0], [1], [0, 0, 1, 1], [], []>} : vector<2x16xf32>, vector<16x32xf32>, vector<2x32xf32> -> vector<2x32xf32>
    %c136 = arith.constant 136 : index
    %c0_59 = arith.constant 0 : index
    %233 = vector.load %arg3[%c136, %c0_59] : memref<184x128xf32, #tpu.memory_space<vmem>>, vector<16x32xf32>
    %cst_60 = arith.constant dense<0.000000e+00> : vector<2x32xf32>
    %234 = tpu.matmul %230, %233, %cst_60 {dimension_numbers = #tpu.dot_dimension_numbers<[1], [0], [0], [1], [0, 0, 1, 1], [], []>} : vector<2x16xf32>, vector<16x32xf32>, vector<2x32xf32> -> vector<2x32xf32>
    %235 = arith.addf %232, %234 : vector<2x32xf32>
    %c3_61 = arith.constant 3 : index
    %c0_62 = arith.constant 0 : index
    %236 = vector.load %arg4[%c3_61, %c0_62] : memref<5x128xf32, #tpu.memory_space<vmem>>, vector<1x32xf32>
    %237 = vector.broadcast %236 : vector<1x32xf32> to vector<2x32xf32>
    %238 = arith.addf %235, %237 : vector<2x32xf32>
    %cst_63 = arith.constant 0.000000e+00 : f32
    %239 = vector.broadcast %cst_63 : f32 to vector<2x32xf32>
    %240 = arith.maximumf %238, %239 : vector<2x32xf32>
    %c152 = arith.constant 152 : index
    %c0_64 = arith.constant 0 : index
    %241 = vector.load %arg3[%c152, %c0_64] : memref<184x128xf32, #tpu.memory_space<vmem>>, vector<32x4xf32>
    %cst_65 = arith.constant dense<0.000000e+00> : vector<2x4xf32>
    %242 = tpu.matmul %240, %241, %cst_65 {dimension_numbers = #tpu.dot_dimension_numbers<[1], [0], [0], [1], [0, 0, 1, 1], [], []>} : vector<2x32xf32>, vector<32x4xf32>, vector<2x4xf32> -> vector<2x4xf32>
    %c4_66 = arith.constant 4 : index
    %c0_67 = arith.constant 0 : index
    %243 = vector.load %arg4[%c4_66, %c0_67] : memref<5x128xf32, #tpu.memory_space<vmem>>, vector<1x4xf32>
    %244 = vector.broadcast %243 : vector<1x4xf32> to vector<2x4xf32>
    %245 = arith.addf %242, %244 : vector<2x4xf32>
    %cst_68 = arith.constant 0.000000e+00 : f32
    %246 = vector.broadcast %cst_68 : f32 to vector<2x128xf32>
    %c0_69 = arith.constant 0 : index
    %c0_70 = arith.constant 0 : index
    %247 = vector.load %arg5[%c0_69, %c0_70] : memref<2x128xf32, #tpu.memory_space<vmem>>, vector<2x128xf32>
    tpu.vector_store %arg5[%c0_69, %c0_70], %246 {strides = array<i32>} : memref<2x128xf32, #tpu.memory_space<vmem>>, vector<2x128xf32>,
    %c0_71 = arith.constant 0 : index
    %c0_72 = arith.constant 0 : index
    %248 = vector.load %arg5[%c0_71, %c0_72] : memref<2x128xf32, #tpu.memory_space<vmem>>, vector<2x32xf32>
    tpu.vector_store %arg5[%c0_71, %c0_72], %240 {strides = array<i32>} : memref<2x128xf32, #tpu.memory_space<vmem>>, vector<2x32xf32>,
    %c0_73 = arith.constant 0 : index
    %c32_74 = arith.constant 32 : index
    %249 = vector.load %arg5[%c0_73, %c32_74] : memref<2x128xf32, #tpu.memory_space<vmem>>, vector<2x4xf32>
    tpu.vector_store %arg5[%c0_73, %c32_74], %245 {strides = array<i32>} : memref<2x128xf32, #tpu.memory_space<vmem>>, vector<2x4xf32>,
    return
  }
}

</mosaic_0001>

<llo_original>
// kernel: ef_model_al_forward.1
$region0: #{ef_model_al_forward.1}
  #allocation0 [shape = 'u32[]', space=smem, size = 0x4, offset = 0x4, fixed_abs, tag = 'smem constant byte address 0x4 - core index']
  #allocation1 [shape = 'u32[144,128]{1,0:T(1,128)}', space=vmem, size = 0x12000, scoped, tag = 'internal scratch']
  #allocation2 [shape = 'f32[16,128]{1,0:T(8,128)}', space=vmem, size = 0x2000, scoped, tag = 'scratch operand']
  %s0 = inlined_call_operand.vmem [shape: f32[2,1], index: 0, kind: input, shape index: {}]
  %s1 = inlined_call_operand.vmem [shape: f32[2,32], index: 1, kind: input, shape index: {}]
  %s2 = inlined_call_operand.vmem [shape: f32[16,24], index: 2, kind: input, shape index: {}]
  %s3 = inlined_call_operand.hbm [shape: f32[184,128], index: 3, kind: input, shape index: {}]
  %s4 = inlined_call_operand.vmem [shape: f32[5,128], index: 4, kind: input, shape index: {}]
  %s5 = inlined_call_operand.vmem [shape: f32[2,128], index: 5, kind: output, shape index: {}]
  %s6 = sld [smem:[#allocation0]]
  $region34: #{ef_model_al_forward.1} parent=0
    _
  %s8 = ssub.s32 1, %s6
  %s9 = scalar_select 0, %s8, %s6
  $region1: #{ef_model_al_forward.1} parent=0
    #allocation3 [shape = 'u8[94208]{0}', space=vmem, size = 0x17000, scoped, tag = 'input window, operand 3, single buffered']
    #allocation4 [shape = 's32[1]{0}', space=sflag, size = 0x4, scoped, tag = 'scoped memory for ef_model_al_forward.1']
    %10 = vsyncpa [#allocation4], 0
    // Predicated region
    $region2: #{ef_model_al_forward.1} parent=1 // pred_check
      _
    $region3: #{ef_model_al_forward.1} parent=1 // pred_check_branch
      %12 = sbr.rel (0) target = $region5
    $region4: #{ef_model_al_forward.1} parent=1 // pred_region
      _
    $region5: #{ef_model_al_forward.1} parent=1 // pred_fallthru
      _
    // Predicated region
    $region6: #{ef_model_al_forward.1} parent=1 // pred_check
      _
    $region7: #{ef_model_al_forward.1} parent=1 // pred_check_branch
      %14 = sbr.rel (0) target = $region9
    $region8: #{ef_model_al_forward.1} parent=1 // pred_region
      _
    $region9: #{ef_model_al_forward.1} parent=1 // pred_fallthru
      _
    // Predicated region
    $region10: #{ef_model_al_forward.1} parent=1 // pred_check
      _
    $region11: #{ef_model_al_forward.1} parent=1 // pred_check_branch
      %16 = sbr.rel (0) target = $region13
    $region12: #{ef_model_al_forward.1} parent=1 // pred_region
      _
    $region13: #{ef_model_al_forward.1} parent=1 // pred_fallthru
      _
    // Predicated region
    $region14: #{ef_model_al_forward.1} parent=1 // pred_check
      _
    $region15: #{ef_model_al_forward.1} parent=1 // pred_check_branch
      %18 = sbr.rel (0) target = $region17
    $region16: #{ef_model_al_forward.1} parent=1 // pred_region
      %s20 = ssub.s32 2944, 2944
      %21 = vsyncadd [#allocation4], %s20
      %s22 = sshll.u32 [#allocation3], 4
      %s23 = int_to_ptr.vmem [resolvable:$true] %s22
      %28 = dma.hbm_to_vmem [thread:$0]  %s3, 2944, %s23, [#allocation4], 128, 128, 8
    $region17: #{ef_model_al_forward.1} parent=1 // pred_fallthru
      _
    // Predicated region
    $region18: #{ef_model_al_forward.1} parent=1 // pred_check
      _
    $region19: #{ef_model_al_forward.1} parent=1 // pred_check_branch
      %30 = sbr.rel (0) target = $region21
    $region20: #{ef_model_al_forward.1} parent=1 // pred_region
      _
    $region21: #{ef_model_al_forward.1} parent=1 // pred_fallthru
      _
    // Predicated region
    $region22: #{ef_model_al_forward.1} parent=1 // pred_check
      _
    $region23: #{ef_model_al_forward.1} parent=1 // pred_check_branch
      %32 = sbr.rel (0) target = $region25
    $region24: #{ef_model_al_forward.1} parent=1 // pred_region
      %33 = dma.done [#allocation4], 2944
    $region25: #{ef_model_al_forward.1} parent=1 // pred_fallthru
      _
    %v34 = vld [vmem:[%s1] sm:$0x3]
    %v35 = vld [vmem:[#allocation3] sm:$0xff]
    %v36 = vld [vmem:[#allocation3 + $0x8] sm:$0xff]
    %v37 = vld [vmem:[#allocation3 + $0x10] sm:$0xff]
    %v38 = vld [vmem:[#allocation3 + $0x18] sm:$0xff]
    %v39 = vld [vmem:[%s4] sm:$0x1]
    %v40 = vlaneseq
    %v41 = vshrl.u32 %v40, 7
    %v42 = vsub.s32 0, %v41
    %v43 = vrot.slane %v39, %v42
    %vm44 = vcmask 261120
    %v46 = vsel %vm44, %v34, 0
    %48 = vmatprep.subr.mxu0 0.0
    %49 = vmatpush1.msra.mxu0 %v35
    %50 = vmatprep.subr.mxu0 0.0
    %51 = vmatpush1.msra.mxu0 %v36
    %52 = vmatprep.subr.mxu0 0.0
    %53 = vmatpush1.msra.mxu0 %v37
    %54 = vmatprep.subr.mxu0 0.0
    %55 = vmatpush1.msra.mxu0 %v38
    %56 = vmatprep.subr.mxu0 0.0
    %57 = vmatpush1.msra.mxu0 0.0
    %58 = vmatprep.subr.mxu0 0.0
    %59 = vmatpush1.msra.mxu0 0.0
    %60 = vmatprep.subr.mxu0 0.0
    %61 = vmatpush1.msra.mxu0 0.0
    %62 = vmatprep.subr.mxu0 0.0
    %63 = vmatpush1.msra.mxu0 0.0
    %64 = vmatprep.subr.mxu0 0.0
    %65 = vmatpush1.msra.mxu0 0.0
    %66 = vmatprep.subr.mxu0 0.0
    %67 = vmatpush1.msra.mxu0 0.0
    %68 = vmatprep.subr.mxu0 0.0
    %69 = vmatpush1.msra.mxu0 0.0
    %70 = vmatprep.subr.mxu0 0.0
    %71 = vmatpush1.msra.mxu0 0.0
    %72 = vmatprep.subr.mxu0 0.0
    %73 = vmatpush1.msra.mxu0 0.0
    %74 = vmatprep.subr.mxu0 0.0
    %75 = vmatpush1.msra.mxu0 0.0
    %76 = vmatprep.subr.mxu0 0.0
    %77 = vmatpush1.msra.mxu0 0.0
    %78 = vmatprep.subr.mxu0 0.0
    %79 = vmatpush1.msra.mxu0 0.0
    %80 = vmatprep.subr.mxu0 0.0
    %81 = vmatpush1.msra.mxu0 0.0
    %82 = vmatprep.subr.mxu0 0.0
    %83 = vmatpush1.msra.mxu0 0.0
    %84 = vmatprep.subr.mxu0 0.0
    %85 = vmatpush1.msra.mxu0 0.0
    %86 = vmatprep.subr.mxu0 0.0
    %87 = vmatpush1.msra.mxu0 0.0
    %88 = vmatprep.subr.mxu0 0.0
    %89 = vmatpush1.msra.mxu0 0.0
    %90 = vmatprep.subr.mxu0 0.0
    %91 = vmatpush1.msra.mxu0 0.0
    %92 = vmatprep.subr.mxu0 0.0
    %93 = vmatpush1.msra.mxu0 0.0
    %94 = vmatprep.subr.mxu0 0.0
    %95 = vmatpush1.msra.mxu0 0.0
    %96 = vmatprep.subr.mxu0 0.0
    %97 = vmatpush1.msra.mxu0 0.0
    %98 = vmatprep.subr.mxu0 0.0
    %99 = vmatpush1.msra.mxu0 0.0
    %100 = vmatprep.subr.mxu0 0.0
    %101 = vmatpush1.msra.mxu0 0.0
    %102 = vmatprep.subr.mxu0 0.0
    %103 = vmatpush1.msra.mxu0 0.0
    %104 = vmatprep.subr.mxu0 0.0
    %105 = vmatpush1.msra.mxu0 0.0
    %106 = vmatprep.subr.mxu0 0.0
    %107 = vmatpush1.msra.mxu0 0.0
    %108 = vmatprep.subr.mxu0 0.0
    %109 = vmatpush1.msra.mxu0 0.0
    %110 = vmatprep.subr.mxu0 0.0
    %111 = vmatpush1.msra.mxu0 0.0
    %112 = vmatprep.mubr.f32.mxu0 0.0
    %113 = vmatmul.mubr.f32.gmra.mrb[0].mxu0 %v46
    %v114 = vpop.f32.mrb[0].mxu0
    %v115 = vadd.f32 %v43, %v114
    %v116 = vpop.f32.mrb[0].mxu0
    %117 = vdwg.mxu0
    %v118 = vmax.f32 %v115, 0.0
    %v119 = vld [vmem:[%s2] sm:$0xff]
    %v120 = vld [vmem:[%s2 + $0x8] sm:$0xff]
    %v121 = vld [vmem:[#allocation3 + $0x40] sm:$0xff]
    %v122 = vld [vmem:[#allocation3 + $0x48] sm:$0xff]
    %v123 = vld [vmem:[#allocation3 + $0x50] sm:$0xff]
    %v124 = vld [vmem:[%s4 + $0x1] sm:$0x1]
    %v125 = vlaneseq
    %v126 = vshrl.u32 %v125, 7
    %v127 = vsub.s32 0, %v126
    %v128 = vrot.slane %v124, %v127
    %vm129 = vcmask 195584
    %v131 = vsel %vm129, %v119, 0
    %v134 = vsel %vm129, %v120, 0
    %136 = vmatprep.subr.mxu0 0.0
    %137 = vmatpush1.msra.mxu0 %v121
    %138 = vmatprep.subr.mxu0 0.0
    %139 = vmatpush1.msra.mxu0 %v122
    %140 = vmatprep.subr.mxu0 0.0
    %141 = vmatpush1.msra.mxu0 %v123
    %142 = vmatprep.subr.mxu0 0.0
    %143 = vmatpush1.msra.mxu0 0.0
    %144 = vmatprep.subr.mxu0 0.0
    %145 = vmatpush1.msra.mxu0 0.0
    %146 = vmatprep.subr.mxu0 0.0
    %147 = vmatpush1.msra.mxu0 0.0
    %148 = vmatprep.subr.mxu0 0.0
    %149 = vmatpush1.msra.mxu0 0.0
    %150 = vmatprep.subr.mxu0 0.0
    %151 = vmatpush1.msra.mxu0 0.0
    %152 = vmatprep.subr.mxu0 0.0
    %153 = vmatpush1.msra.mxu0 0.0
    %154 = vmatprep.subr.mxu0 0.0
    %155 = vmatpush1.msra.mxu0 0.0
    %156 = vmatprep.subr.mxu0 0.0
    %157 = vmatpush1.msra.mxu0 0.0
    %158 = vmatprep.subr.mxu0 0.0
    %159 = vmatpush1.msra.mxu0 0.0
    %160 = vmatprep.subr.mxu0 0.0
    %161 = vmatpush1.msra.mxu0 0.0
    %162 = vmatprep.subr.mxu0 0.0
    %163 = vmatpush1.msra.mxu0 0.0
    %164 = vmatprep.subr.mxu0 0.0
    %165 = vmatpush1.msra.mxu0 0.0
    %166 = vmatprep.subr.mxu0 0.0
    %167 = vmatpush1.msra.mxu0 0.0
    %168 = vmatprep.subr.mxu0 0.0
    %169 = vmatpush1.msra.mxu0 0.0
    %170 = vmatprep.subr.mxu0 0.0
    %171 = vmatpush1.msra.mxu0 0.0
    %172 = vmatprep.subr.mxu0 0.0
    %173 = vmatpush1.msra.mxu0 0.0
    %174 = vmatprep.subr.mxu0 0.0
    %175 = vmatpush1.msra.mxu0 0.0
    %176 = vmatprep.subr.mxu0 0.0
    %177 = vmatpush1.msra.mxu0 0.0
    %178 = vmatprep.subr.mxu0 0.0
    %179 = vmatpush1.msra.mxu0 0.0
    %180 = vmatprep.subr.mxu0 0.0
    %181 = vmatpush1.msra.mxu0 0.0
    %182 = vmatprep.subr.mxu0 0.0
    %183 = vmatpush1.msra.mxu0 0.0
    %184 = vmatprep.subr.mxu0 0.0
    %185 = vmatpush1.msra.mxu0 0.0
    %186 = vmatprep.subr.mxu0 0.0
    %187 = vmatpush1.msra.mxu0 0.0
    %188 = vmatprep.subr.mxu0 0.0
    %189 = vmatpush1.msra.mxu0 0.0
    %190 = vmatprep.subr.mxu0 0.0
    %191 = vmatpush1.msra.mxu0 0.0
    %192 = vmatprep.subr.mxu0 0.0
    %193 = vmatpush1.msra.mxu0 0.0
    %194 = vmatprep.subr.mxu0 0.0
    %195 = vmatpush1.msra.mxu0 0.0
    %196 = vmatprep.subr.mxu0 0.0
    %197 = vmatpush1.msra.mxu0 0.0
    %198 = vmatprep.subr.mxu0 0.0
    %199 = vmatpush1.msra.mxu0 0.0
    %200 = vmatprep.mubr.f32.mxu0 0.0
    %201 = vmatmul.mubr.f32.gmra.mrb[0].mxu0 %v131
    %v202 = vpop.f32.mrb[0].mxu0
    %v203 = vadd.f32 %v128, %v202
    %v204 = vpop.f32.mrb[0].mxu0
    %205 = vmatprep.mubr.f32.mxu0 0.0
    %206 = vmatmul.mubr.f32.gmra.mrb[0].mxu0 %v134
    %v207 = vpop.f32.mrb[0].mxu0
    %v208 = vadd.f32 %v128, %v207
    %v209 = vpop.f32.mrb[0].mxu0
    %210 = vdwg.mxu0
    %211 = vst [vmem:[#allocation2] sm:$0xff] %v203
    %212 = vst [vmem:[#allocation2 + $0x8] sm:$0xff] %v208
    %v213 = vld [vmem:[#allocation3 + $0x20] sm:$0xff]
    %v214 = vld [vmem:[#allocation3 + $0x28] sm:$0xff]
    %v215 = vld [vmem:[#allocation3 + $0x30] sm:$0xff]
    %v216 = vld [vmem:[#allocation3 + $0x38] sm:$0xff]
    %v217 = vld [vmem:[%s0] sm:$0x3]
    %v218 = vld [vmem:[#allocation2] ss:$8 sm:$0x3]
    %v220 = vsel %vm44, 0.0, 0
    %222 = vmatprep.subr.mxu0 0.0
    %223 = vmatpush1.msra.mxu0 %v213
    %224 = vmatprep.subr.mxu0 0.0
    %225 = vmatpush1.msra.mxu0 %v214
    %226 = vmatprep.subr.mxu0 0.0
    %227 = vmatpush1.msra.mxu0 %v215
    %228 = vmatprep.subr.mxu0 0.0
    %229 = vmatpush1.msra.mxu0 %v216
    %230 = vmatprep.subr.mxu0 0.0
    %231 = vmatpush1.msra.mxu0 0.0
    %232 = vmatprep.subr.mxu0 0.0
    %233 = vmatpush1.msra.mxu0 0.0
    %234 = vmatprep.subr.mxu0 0.0
    %235 = vmatpush1.msra.mxu0 0.0
    %236 = vmatprep.subr.mxu0 0.0
    %237 = vmatpush1.msra.mxu0 0.0
    %238 = vmatprep.subr.mxu0 0.0
    %239 = vmatpush1.msra.mxu0 0.0
    %240 = vmatprep.subr.mxu0 0.0
    %241 = vmatpush1.msra.mxu0 0.0
    %242 = vmatprep.subr.mxu0 0.0
    %243 = vmatpush1.msra.mxu0 0.0
    %244 = vmatprep.subr.mxu0 0.0
    %245 = vmatpush1.msra.mxu0 0.0
    %246 = vmatprep.subr.mxu0 0.0
    %247 = vmatpush1.msra.mxu0 0.0
    %248 = vmatprep.subr.mxu0 0.0
    %249 = vmatpush1.msra.mxu0 0.0
    %250 = vmatprep.subr.mxu0 0.0
    %251 = vmatpush1.msra.mxu0 0.0
    %252 = vmatprep.subr.mxu0 0.0
    %253 = vmatpush1.msra.mxu0 0.0
    %254 = vmatprep.subr.mxu0 0.0
    %255 = vmatpush1.msra.mxu0 0.0
    %256 = vmatprep.subr.mxu0 0.0
    %257 = vmatpush1.msra.mxu0 0.0
    %258 = vmatprep.subr.mxu0 0.0
    %259 = vmatpush1.msra.mxu0 0.0
    %260 = vmatprep.subr.mxu0 0.0
    %261 = vmatpush1.msra.mxu0 0.0
    %262 = vmatprep.subr.mxu0 0.0
    %263 = vmatpush1.msra.mxu0 0.0
    %264 = vmatprep.subr.mxu0 0.0
    %265 = vmatpush1.msra.mxu0 0.0
    %266 = vmatprep.subr.mxu0 0.0
    %267 = vmatpush1.msra.mxu0 0.0
    %268 = vmatprep.subr.mxu0 0.0
    %269 = vmatpush1.msra.mxu0 0.0
    %270 = vmatprep.subr.mxu0 0.0
    %271 = vmatpush1.msra.mxu0 0.0
    %272 = vmatprep.subr.mxu0 0.0
    %273 = vmatpush1.msra.mxu0 0.0
    %274 = vmatprep.subr.mxu0 0.0
    %275 = vmatpush1.msra.mxu0 0.0
    %276 = vmatprep.subr.mxu0 0.0
    %277 = vmatpush1.msra.mxu0 0.0
    %278 = vmatprep.subr.mxu0 0.0
    %279 = vmatpush1.msra.mxu0 0.0
    %280 = vmatprep.subr.mxu0 0.0
    %281 = vmatpush1.msra.mxu0 0.0
    %282 = vmatprep.subr.mxu0 0.0
    %283 = vmatpush1.msra.mxu0 0.0
    %284 = vmatprep.subr.mxu0 0.0
    %285 = vmatpush1.msra.mxu0 0.0
    %286 = vmatprep.mubr.f32.mxu0 0.0
    %287 = vmatmul.mubr.f32.gmra.mrb[0].mxu0 %v220
    %v288 = vpop.f32.mrb[0].mxu0
    %v289 = vadd.f32 0.0, %v288
    %v290 = vpop.f32.mrb[0].mxu0
    %291 = vdwg.mxu0
    %v292 = vadd.f32 %v218, %v289
    %v293 = vxor.u32 %v292, 2147483648
    %v294 = vmul.f32 %v293, 1.442695
    %v295 = vpow.pop %v294
    %v296 = vadd.f32 %v295, 1.0
    %v297 = vrcp.pop %v296
    %v298 = vmul.f32 1.0, %v297
    %v299 = vtanh.pop %v292
    %v300 = vmul.f32 %v298, 0.0
    %302 = vrot.lane.b32.xlu0 %v299, 64
    %v303 = vpop.permute.xlu0 %302
    %v305 = vmul.f32 %v298, %v303
    %307 = vrot.lane.b32.xlu0 %v305, 32
    %v308 = vpop.permute.xlu0 %307
    %v310 = vadd.f32 %v300, %v308
    %v311 = vtanh.pop %v310
    %313 = vrot.lane.b32.xlu0 %v311, 64
    %v314 = vpop.permute.xlu0 %313
    %v316 = vmul.f32 %v298, %v314
    %vm317 = vcmp.gt.f32.partialorder %v217, 0.0
    %v318 = vsel %vm317, 1, 0
    %319 = vset.pattern.permute.xlu0 0
    %320 = vperm.xlu0 %319, %v318
    %v321 = vpop.permute.xlu0 %320
    %vm322 = vcmp.eq.s32.totalorder %v321, 1
    %v323 = vsel %vm322, %v310, 0.0
    %v324 = vsel %vm322, %v316, 0.0
    %s325 = scalar_lea.vmem [#allocation2], 1
    %v326 = vld [vmem:[%s325] ss:$8 sm:$0x3]
    %328 = vrot.lane.b32.xlu0 %v324, 32
    %v329 = vpop.permute.xlu0 %328
    %v330 = vsel %vm44, %v329, 0
    %332 = vmatprep.subr.mxu0 0.0
    %333 = vmatpush1.msra.mxu0 %v213
    %334 = vmatprep.subr.mxu0 0.0
    %335 = vmatpush1.msra.mxu0 %v214
    %336 = vmatprep.subr.mxu0 0.0
    %337 = vmatpush1.msra.mxu0 %v215
    %338 = vmatprep.subr.mxu0 0.0
    %339 = vmatpush1.msra.mxu0 %v216
    %340 = vmatprep.subr.mxu0 0.0
    %341 = vmatpush1.msra.mxu0 0.0
    %342 = vmatprep.subr.mxu0 0.0
    %343 = vmatpush1.msra.mxu0 0.0
    %344 = vmatprep.subr.mxu0 0.0
    %345 = vmatpush1.msra.mxu0 0.0
    %346 = vmatprep.subr.mxu0 0.0
    %347 = vmatpush1.msra.mxu0 0.0
    %348 = vmatprep.subr.mxu0 0.0
    %349 = vmatpush1.msra.mxu0 0.0
    %350 = vmatprep.subr.mxu0 0.0
    %351 = vmatpush1.msra.mxu0 0.0
    %352 = vmatprep.subr.mxu0 0.0
    %353 = vmatpush1.msra.mxu0 0.0
    %354 = vmatprep.subr.mxu0 0.0
    %355 = vmatpush1.msra.mxu0 0.0
    %356 = vmatprep.subr.mxu0 0.0
    %357 = vmatpush1.msra.mxu0 0.0
    %358 = vmatprep.subr.mxu0 0.0
    %359 = vmatpush1.msra.mxu0 0.0
    %360 = vmatprep.subr.mxu0 0.0
    %361 = vmatpush1.msra.mxu0 0.0
    %362 = vmatprep.subr.mxu0 0.0
    %363 = vmatpush1.msra.mxu0 0.0
    %364 = vmatprep.subr.mxu0 0.0
    %365 = vmatpush1.msra.mxu0 0.0
    %366 = vmatprep.subr.mxu0 0.0
    %367 = vmatpush1.msra.mxu0 0.0
    %368 = vmatprep.subr.mxu0 0.0
    %369 = vmatpush1.msra.mxu0 0.0
    %370 = vmatprep.subr.mxu0 0.0
    %371 = vmatpush1.msra.mxu0 0.0
    %372 = vmatprep.subr.mxu0 0.0
    %373 = vmatpush1.msra.mxu0 0.0
    %374 = vmatprep.subr.mxu0 0.0
    %375 = vmatpush1.msra.mxu0 0.0
    %376 = vmatprep.subr.mxu0 0.0
    %377 = vmatpush1.msra.mxu0 0.0
    %378 = vmatprep.subr.mxu0 0.0
    %379 = vmatpush1.msra.mxu0 0.0
    %380 = vmatprep.subr.mxu0 0.0
    %381 = vmatpush1.msra.mxu0 0.0
    %382 = vmatprep.subr.mxu0 0.0
    %383 = vmatpush1.msra.mxu0 0.0
    %384 = vmatprep.subr.mxu0 0.0
    %385 = vmatpush1.msra.mxu0 0.0
    %386 = vmatprep.subr.mxu0 0.0
    %387 = vmatpush1.msra.mxu0 0.0
    %388 = vmatprep.subr.mxu0 0.0
    %389 = vmatpush1.msra.mxu0 0.0
    %390 = vmatprep.subr.mxu0 0.0
    %391 = vmatpush1.msra.mxu0 0.0
    %392 = vmatprep.subr.mxu0 0.0
    %393 = vmatpush1.msra.mxu0 0.0
    %394 = vmatprep.subr.mxu0 0.0
    %395 = vmatpush1.msra.mxu0 0.0
    %396 = vmatprep.mubr.f32.mxu0 0.0
    %397 = vmatmul.mubr.f32.gmra.mrb[0].mxu0 %v330
    %v398 = vpop.f32.mrb[0].mxu0
    %v399 = vadd.f32 0.0, %v398
    %v400 = vpop.f32.mrb[0].mxu0
    %401 = vdwg.mxu0
    %v402 = vadd.f32 %v326, %v399
    %v403 = vxor.u32 %v402, 2147483648
    %v404 = vmul.f32 %v403, 1.442695
    %v405 = vpow.pop %v404
    %v406 = vadd.f32 %v405, 1.0
    %v407 = vrcp.pop %v406
    %v408 = vmul.f32 1.0, %v407
    %v409 = vtanh.pop %v402
    %v410 = vmul.f32 %v408, %v323
    %412 = vrot.lane.b32.xlu0 %v409, 64
    %v413 = vpop.permute.xlu0 %412
    %v415 = vmul.f32 %v408, %v413
    %417 = vrot.lane.b32.xlu0 %v415, 32
    %v418 = vpop.permute.xlu0 %417
    %v420 = vadd.f32 %v410, %v418
    %v421 = vtanh.pop %v420
    %423 = vrot.lane.b32.xlu0 %v421, 64
    %v424 = vpop.permute.xlu0 %423
    %v426 = vmul.f32 %v408, %v424
    %vm427 = vcmp.gt.f32.partialorder %v217, 1.0
    %v428 = vsel %vm427, 1, 0
    %429 = vset.pattern.permute.xlu0 0
    %430 = vperm.xlu0 %429, %v428
    %v431 = vpop.permute.xlu0 %430
    %vm432 = vcmp.eq.s32.totalorder %v431, 1
    %v433 = vsel %vm432, %v420, %v323
    %v434 = vsel %vm432, %v426, %v324
    %s435 = scalar_lea.vmem [#allocation2], 2
    %v436 = vld [vmem:[%s435] ss:$8 sm:$0x3]
    %438 = vrot.lane.b32.xlu0 %v434, 32
    %v439 = vpop.permute.xlu0 %438
    %v440 = vsel %vm44, %v439, 0
    %442 = vmatprep.subr.mxu0 0.0
    %443 = vmatpush1.msra.mxu0 %v213
    %444 = vmatprep.subr.mxu0 0.0
    %445 = vmatpush1.msra.mxu0 %v214
    %446 = vmatprep.subr.mxu0 0.0
    %447 = vmatpush1.msra.mxu0 %v215
    %448 = vmatprep.subr.mxu0 0.0
    %449 = vmatpush1.msra.mxu0 %v216
    %450 = vmatprep.subr.mxu0 0.0
    %451 = vmatpush1.msra.mxu0 0.0
    %452 = vmatprep.subr.mxu0 0.0
    %453 = vmatpush1.msra.mxu0 0.0
    %454 = vmatprep.subr.mxu0 0.0
    %455 = vmatpush1.msra.mxu0 0.0
    %456 = vmatprep.subr.mxu0 0.0
    %457 = vmatpush1.msra.mxu0 0.0
    %458 = vmatprep.subr.mxu0 0.0
    %459 = vmatpush1.msra.mxu0 0.0
    %460 = vmatprep.subr.mxu0 0.0
    %461 = vmatpush1.msra.mxu0 0.0
    %462 = vmatprep.subr.mxu0 0.0
    %463 = vmatpush1.msra.mxu0 0.0
    %464 = vmatprep.subr.mxu0 0.0
    %465 = vmatpush1.msra.mxu0 0.0
    %466 = vmatprep.subr.mxu0 0.0
    %467 = vmatpush1.msra.mxu0 0.0
    %468 = vmatprep.subr.mxu0 0.0
    %469 = vmatpush1.msra.mxu0 0.0
    %470 = vmatprep.subr.mxu0 0.0
    %471 = vmatpush1.msra.mxu0 0.0
    %472 = vmatprep.subr.mxu0 0.0
    %473 = vmatpush1.msra.mxu0 0.0
    %474 = vmatprep.subr.mxu0 0.0
    %475 = vmatpush1.msra.mxu0 0.0
    %476 = vmatprep.subr.mxu0 0.0
    %477 = vmatpush1.msra.mxu0 0.0
    %478 = vmatprep.subr.mxu0 0.0
    %479 = vmatpush1.msra.mxu0 0.0
    %480 = vmatprep.subr.mxu0 0.0
    %481 = vmatpush1.msra.mxu0 0.0
    %482 = vmatprep.subr.mxu0 0.0
    %483 = vmatpush1.msra.mxu0 0.0
    %484 = vmatprep.subr.mxu0 0.0
    %485 = vmatpush1.msra.mxu0 0.0
    %486 = vmatprep.subr.mxu0 0.0
    %487 = vmatpush1.msra.mxu0 0.0
    %488 = vmatprep.subr.mxu0 0.0
    %489 = vmatpush1.msra.mxu0 0.0
    %490 = vmatprep.subr.mxu0 0.0
    %491 = vmatpush1.msra.mxu0 0.0
    %492 = vmatprep.subr.mxu0 0.0
    %493 = vmatpush1.msra.mxu0 0.0
    %494 = vmatprep.subr.mxu0 0.0
    %495 = vmatpush1.msra.mxu0 0.0
    %496 = vmatprep.subr.mxu0 0.0
    %497 = vmatpush1.msra.mxu0 0.0
    %498 = vmatprep.subr.mxu0 0.0
    %499 = vmatpush1.msra.mxu0 0.0
    %500 = vmatprep.subr.mxu0 0.0
    %501 = vmatpush1.msra.mxu0 0.0
    %502 = vmatprep.subr.mxu0 0.0
    %503 = vmatpush1.msra.mxu0 0.0
    %504 = vmatprep.subr.mxu0 0.0
    %505 = vmatpush1.msra.mxu0 0.0
    %506 = vmatprep.mubr.f32.mxu0 0.0
    %507 = vmatmul.mubr.f32.gmra.mrb[0].mxu0 %v440
    %v508 = vpop.f32.mrb[0].mxu0
    %v509 = vadd.f32 0.0, %v508
    %v510 = vpop.f32.mrb[0].mxu0
    %511 = vdwg.mxu0
    %v512 = vadd.f32 %v436, %v509
    %v513 = vxor.u32 %v512, 2147483648
    %v514 = vmul.f32 %v513, 1.442695
    %v515 = vpow.pop %v514
    %v516 = vadd.f32 %v515, 1.0
    %v517 = vrcp.pop %v516
    %v518 = vmul.f32 1.0, %v517
    %v519 = vtanh.pop %v512
    %v520 = vmul.f32 %v518, %v433
    %522 = vrot.lane.b32.xlu0 %v519, 64
    %v523 = vpop.permute.xlu0 %522
    %v525 = vmul.f32 %v518, %v523
    %527 = vrot.lane.b32.xlu0 %v525, 32
    %v528 = vpop.permute.xlu0 %527
    %v530 = vadd.f32 %v520, %v528
    %v531 = vtanh.pop %v530
    %533 = vrot.lane.b32.xlu0 %v531, 64
    %v534 = vpop.permute.xlu0 %533
    %v536 = vmul.f32 %v518, %v534
    %vm537 = vcmp.gt.f32.partialorder %v217, 2.0
    %v538 = vsel %vm537, 1, 0
    %539 = vset.pattern.permute.xlu0 0
    %540 = vperm.xlu0 %539, %v538
    %v541 = vpop.permute.xlu0 %540
    %vm542 = vcmp.eq.s32.totalorder %v541, 1
    %v543 = vsel %vm542, %v530, %v433
    %v544 = vsel %vm542, %v536, %v434
    %s545 = scalar_lea.vmem [#allocation2], 3
    %v546 = vld [vmem:[%s545] ss:$8 sm:$0x3]
    %548 = vrot.lane.b32.xlu0 %v544, 32
    %v549 = vpop.permute.xlu0 %548
    %v550 = vsel %vm44, %v549, 0
    %552 = vmatprep.subr.mxu0 0.0
    %553 = vmatpush1.msra.mxu0 %v213
    %554 = vmatprep.subr.mxu0 0.0
    %555 = vmatpush1.msra.mxu0 %v214
    %556 = vmatprep.subr.mxu0 0.0
    %557 = vmatpush1.msra.mxu0 %v215
    %558 = vmatprep.subr.mxu0 0.0
    %559 = vmatpush1.msra.mxu0 %v216
    %560 = vmatprep.subr.mxu0 0.0
    %561 = vmatpush1.msra.mxu0 0.0
    %562 = vmatprep.subr.mxu0 0.0
    %563 = vmatpush1.msra.mxu0 0.0
    %564 = vmatprep.subr.mxu0 0.0
    %565 = vmatpush1.msra.mxu0 0.0
    %566 = vmatprep.subr.mxu0 0.0
    %567 = vmatpush1.msra.mxu0 0.0
    %568 = vmatprep.subr.mxu0 0.0
    %569 = vmatpush1.msra.mxu0 0.0
    %570 = vmatprep.subr.mxu0 0.0
    %571 = vmatpush1.msra.mxu0 0.0
    %572 = vmatprep.subr.mxu0 0.0
    %573 = vmatpush1.msra.mxu0 0.0
    %574 = vmatprep.subr.mxu0 0.0
    %575 = vmatpush1.msra.mxu0 0.0
    %576 = vmatprep.subr.mxu0 0.0
    %577 = vmatpush1.msra.mxu0 0.0
    %578 = vmatprep.subr.mxu0 0.0
    %579 = vmatpush1.msra.mxu0 0.0
    %580 = vmatprep.subr.mxu0 0.0
    %581 = vmatpush1.msra.mxu0 0.0
    %582 = vmatprep.subr.mxu0 0.0
    %583 = vmatpush1.msra.mxu0 0.0
    %584 = vmatprep.subr.mxu0 0.0
    %585 = vmatpush1.msra.mxu0 0.0
    %586 = vmatprep.subr.mxu0 0.0
    %587 = vmatpush1.msra.mxu0 0.0
    %588 = vmatprep.subr.mxu0 0.0
    %589 = vmatpush1.msra.mxu0 0.0
    %590 = vmatprep.subr.mxu0 0.0
    %591 = vmatpush1.msra.mxu0 0.0
    %592 = vmatprep.subr.mxu0 0.0
    %593 = vmatpush1.msra.mxu0 0.0
    %594 = vmatprep.subr.mxu0 0.0
    %595 = vmatpush1.msra.mxu0 0.0
    %596 = vmatprep.subr.mxu0 0.0
    %597 = vmatpush1.msra.mxu0 0.0
    %598 = vmatprep.subr.mxu0 0.0
    %599 = vmatpush1.msra.mxu0 0.0
    %600 = vmatprep.subr.mxu0 0.0
    %601 = vmatpush1.msra.mxu0 0.0
    %602 = vmatprep.subr.mxu0 0.0
    %603 = vmatpush1.msra.mxu0 0.0
    %604 = vmatprep.subr.mxu0 0.0
    %605 = vmatpush1.msra.mxu0 0.0
    %606 = vmatprep.subr.mxu0 0.0
    %607 = vmatpush1.msra.mxu0 0.0
    %608 = vmatprep.subr.mxu0 0.0
    %609 = vmatpush1.msra.mxu0 0.0
    %610 = vmatprep.subr.mxu0 0.0
    %611 = vmatpush1.msra.mxu0 0.0
    %612 = vmatprep.subr.mxu0 0.0
    %613 = vmatpush1.msra.mxu0 0.0
    %614 = vmatprep.subr.mxu0 0.0
    %615 = vmatpush1.msra.mxu0 0.0
    %616 = vmatprep.mubr.f32.mxu0 0.0
    %617 = vmatmul.mubr.f32.gmra.mrb[0].mxu0 %v550
    %v618 = vpop.f32.mrb[0].mxu0
    %v619 = vadd.f32 0.0, %v618
    %v620 = vpop.f32.mrb[0].mxu0
    %621 = vdwg.mxu0
    %v622 = vadd.f32 %v546, %v619
    %v623 = vxor.u32 %v622, 2147483648
    %v624 = vmul.f32 %v623, 1.442695
    %v625 = vpow.pop %v624
    %v626 = vadd.f32 %v625, 1.0
    %v627 = vrcp.pop %v626
    %v628 = vmul.f32 1.0, %v627
    %v629 = vtanh.pop %v622
    %v630 = vmul.f32 %v628, %v543
    %632 = vrot.lane.b32.xlu0 %v629, 64
    %v633 = vpop.permute.xlu0 %632
    %v635 = vmul.f32 %v628, %v633
    %637 = vrot.lane.b32.xlu0 %v635, 32
    %v638 = vpop.permute.xlu0 %637
    %v640 = vadd.f32 %v630, %v638
    %v641 = vtanh.pop %v640
    %643 = vrot.lane.b32.xlu0 %v641, 64
    %v644 = vpop.permute.xlu0 %643
    %v646 = vmul.f32 %v628, %v644
    %vm647 = vcmp.gt.f32.partialorder %v217, 3.0
    %v648 = vsel %vm647, 1, 0
    %649 = vset.pattern.permute.xlu0 0
    %650 = vperm.xlu0 %649, %v648
    %v651 = vpop.permute.xlu0 %650
    %vm652 = vcmp.eq.s32.totalorder %v651, 1
    %v653 = vsel %vm652, %v640, %v543
    %v654 = vsel %vm652, %v646, %v544
    %s655 = scalar_lea.vmem [#allocation2], 4
    %v656 = vld [vmem:[%s655] ss:$8 sm:$0x3]
    %658 = vrot.lane.b32.xlu0 %v654, 32
    %v659 = vpop.permute.xlu0 %658
    %v660 = vsel %vm44, %v659, 0
    %662 = vmatprep.subr.mxu0 0.0
    %663 = vmatpush1.msra.mxu0 %v213
    %664 = vmatprep.subr.mxu0 0.0
    %665 = vmatpush1.msra.mxu0 %v214
    %666 = vmatprep.subr.mxu0 0.0
    %667 = vmatpush1.msra.mxu0 %v215
    %668 = vmatprep.subr.mxu0 0.0
    %669 = vmatpush1.msra.mxu0 %v216
    %670 = vmatprep.subr.mxu0 0.0
    %671 = vmatpush1.msra.mxu0 0.0
    %672 = vmatprep.subr.mxu0 0.0
    %673 = vmatpush1.msra.mxu0 0.0
    %674 = vmatprep.subr.mxu0 0.0
    %675 = vmatpush1.msra.mxu0 0.0
    %676 = vmatprep.subr.mxu0 0.0
    %677 = vmatpush1.msra.mxu0 0.0
    %678 = vmatprep.subr.mxu0 0.0
    %679 = vmatpush1.msra.mxu0 0.0
    %680 = vmatprep.subr.mxu0 0.0
    %681 = vmatpush1.msra.mxu0 0.0
    %682 = vmatprep.subr.mxu0 0.0
    %683 = vmatpush1.msra.mxu0 0.0
    %684 = vmatprep.subr.mxu0 0.0
    %685 = vmatpush1.msra.mxu0 0.0
    %686 = vmatprep.subr.mxu0 0.0
    %687 = vmatpush1.msra.mxu0 0.0
    %688 = vmatprep.subr.mxu0 0.0
    %689 = vmatpush1.msra.mxu0 0.0
    %690 = vmatprep.subr.mxu0 0.0
    %691 = vmatpush1.msra.mxu0 0.0
    %692 = vmatprep.subr.mxu0 0.0
    %693 = vmatpush1.msra.mxu0 0.0
    %694 = vmatprep.subr.mxu0 0.0
    %695 = vmatpush1.msra.mxu0 0.0
    %696 = vmatprep.subr.mxu0 0.0
    %697 = vmatpush1.msra.mxu0 0.0
    %698 = vmatprep.subr.mxu0 0.0
    %699 = vmatpush1.msra.mxu0 0.0
    %700 = vmatprep.subr.mxu0 0.0
    %701 = vmatpush1.msra.mxu0 0.0
    %702 = vmatprep.subr.mxu0 0.0
    %703 = vmatpush1.msra.mxu0 0.0
    %704 = vmatprep.subr.mxu0 0.0
    %705 = vmatpush1.msra.mxu0 0.0
    %706 = vmatprep.subr.mxu0 0.0
    %707 = vmatpush1.msra.mxu0 0.0
    %708 = vmatprep.subr.mxu0 0.0
    %709 = vmatpush1.msra.mxu0 0.0
    %710 = vmatprep.subr.mxu0 0.0
    %711 = vmatpush1.msra.mxu0 0.0
    %712 = vmatprep.subr.mxu0 0.0
    %713 = vmatpush1.msra.mxu0 0.0
    %714 = vmatprep.subr.mxu0 0.0
    %715 = vmatpush1.msra.mxu0 0.0
    %716 = vmatprep.subr.mxu0 0.0
    %717 = vmatpush1.msra.mxu0 0.0
    %718 = vmatprep.subr.mxu0 0.0
    %719 = vmatpush1.msra.mxu0 0.0
    %720 = vmatprep.subr.mxu0 0.0
    %721 = vmatpush1.msra.mxu0 0.0
    %722 = vmatprep.subr.mxu0 0.0
    %723 = vmatpush1.msra.mxu0 0.0
    %724 = vmatprep.subr.mxu0 0.0
    %725 = vmatpush1.msra.mxu0 0.0
    %726 = vmatprep.mubr.f32.mxu0 0.0
    %727 = vmatmul.mubr.f32.gmra.mrb[0].mxu0 %v660
    %v728 = vpop.f32.mrb[0].mxu0
    %v729 = vadd.f32 0.0, %v728
    %v730 = vpop.f32.mrb[0].mxu0
    %731 = vdwg.mxu0
    %v732 = vadd.f32 %v656, %v729
    %v733 = vxor.u32 %v732, 2147483648
    %v734 = vmul.f32 %v733, 1.442695
    %v735 = vpow.pop %v734
    %v736 = vadd.f32 %v735, 1.0
    %v737 = vrcp.pop %v736
    %v738 = vmul.f32 1.0, %v737
    %v739 = vtanh.pop %v732
    %v740 = vmul.f32 %v738, %v653
    %742 = vrot.lane.b32.xlu0 %v739, 64
    %v743 = vpop.permute.xlu0 %742
    %v745 = vmul.f32 %v738, %v743
    %747 = vrot.lane.b32.xlu0 %v745, 32
    %v748 = vpop.permute.xlu0 %747
    %v750 = vadd.f32 %v740, %v748
    %v751 = vtanh.pop %v750
    %753 = vrot.lane.b32.xlu0 %v751, 64
    %v754 = vpop.permute.xlu0 %753
    %v756 = vmul.f32 %v738, %v754
    %vm757 = vcmp.gt.f32.partialorder %v217, 4.0
    %v758 = vsel %vm757, 1, 0
    %759 = vset.pattern.permute.xlu0 0
    %760 = vperm.xlu0 %759, %v758
    %v761 = vpop.permute.xlu0 %760
    %vm762 = vcmp.eq.s32.totalorder %v761, 1
    %v763 = vsel %vm762, %v750, %v653
    %v764 = vsel %vm762, %v756, %v654
    %s765 = scalar_lea.vmem [#allocation2], 5
    %v766 = vld [vmem:[%s765] ss:$8 sm:$0x3]
    %768 = vrot.lane.b32.xlu0 %v764, 32
    %v769 = vpop.permute.xlu0 %768
    %v770 = vsel %vm44, %v769, 0
    %772 = vmatprep.subr.mxu0 0.0
    %773 = vmatpush1.msra.mxu0 %v213
    %774 = vmatprep.subr.mxu0 0.0
    %775 = vmatpush1.msra.mxu0 %v214
    %776 = vmatprep.subr.mxu0 0.0
    %777 = vmatpush1.msra.mxu0 %v215
    %778 = vmatprep.subr.mxu0 0.0
    %779 = vmatpush1.msra.mxu0 %v216
    %780 = vmatprep.subr.mxu0 0.0
    %781 = vmatpush1.msra.mxu0 0.0
    %782 = vmatprep.subr.mxu0 0.0
    %783 = vmatpush1.msra.mxu0 0.0
    %784 = vmatprep.subr.mxu0 0.0
    %785 = vmatpush1.msra.mxu0 0.0
    %786 = vmatprep.subr.mxu0 0.0
    %787 = vmatpush1.msra.mxu0 0.0
    %788 = vmatprep.subr.mxu0 0.0
    %789 = vmatpush1.msra.mxu0 0.0
    %790 = vmatprep.subr.mxu0 0.0
    %791 = vmatpush1.msra.mxu0 0.0
    %792 = vmatprep.subr.mxu0 0.0
    %793 = vmatpush1.msra.mxu0 0.0
    %794 = vmatprep.subr.mxu0 0.0
    %795 = vmatpush1.msra.mxu0 0.0
    %796 = vmatprep.subr.mxu0 0.0
    %797 = vmatpush1.msra.mxu0 0.0
    %798 = vmatprep.subr.mxu0 0.0
    %799 = vmatpush1.msra.mxu0 0.0
    %800 = vmatprep.subr.mxu0 0.0
    %801 = vmatpush1.msra.mxu0 0.0
    %802 = vmatprep.subr.mxu0 0.0
    %803 = vmatpush1.msra.mxu0 0.0
    %804 = vmatprep.subr.mxu0 0.0
    %805 = vmatpush1.msra.mxu0 0.0
    %806 = vmatprep.subr.mxu0 0.0
    %807 = vmatpush1.msra.mxu0 0.0
    %808 = vmatprep.subr.mxu0 0.0
    %809 = vmatpush1.msra.mxu0 0.0
    %810 = vmatprep.subr.mxu0 0.0
    %811 = vmatpush1.msra.mxu0 0.0
    %812 = vmatprep.subr.mxu0 0.0
    %813 = vmatpush1.msra.mxu0 0.0
    %814 = vmatprep.subr.mxu0 0.0
    %815 = vmatpush1.msra.mxu0 0.0
    %816 = vmatprep.subr.mxu0 0.0
    %817 = vmatpush1.msra.mxu0 0.0
    %818 = vmatprep.subr.mxu0 0.0
    %819 = vmatpush1.msra.mxu0 0.0
    %820 = vmatprep.subr.mxu0 0.0
    %821 = vmatpush1.msra.mxu0 0.0
    %822 = vmatprep.subr.mxu0 0.0
    %823 = vmatpush1.msra.mxu0 0.0
    %824 = vmatprep.subr.mxu0 0.0
    %825 = vmatpush1.msra.mxu0 0.0
    %826 = vmatprep.subr.mxu0 0.0
    %827 = vmatpush1.msra.mxu0 0.0
    %828 = vmatprep.subr.mxu0 0.0
    %829 = vmatpush1.msra.mxu0 0.0
    %830 = vmatprep.subr.mxu0 0.0
    %831 = vmatpush1.msra.mxu0 0.0
    %832 = vmatprep.subr.mxu0 0.0
    %833 = vmatpush1.msra.mxu0 0.0
    %834 = vmatprep.subr.mxu0 0.0
    %835 = vmatpush1.msra.mxu0 0.0
    %836 = vmatprep.mubr.f32.mxu0 0.0
    %837 = vmatmul.mubr.f32.gmra.mrb[0].mxu0 %v770
    %v838 = vpop.f32.mrb[0].mxu0
    %v839 = vadd.f32 0.0, %v838
    %v840 = vpop.f32.mrb[0].mxu0
    %841 = vdwg.mxu0
    %v842 = vadd.f32 %v766, %v839
    %v843 = vxor.u32 %v842, 2147483648
    %v844 = vmul.f32 %v843, 1.442695
    %v845 = vpow.pop %v844
    %v846 = vadd.f32 %v845, 1.0
    %v847 = vrcp.pop %v846
    %v848 = vmul.f32 1.0, %v847
    %v849 = vtanh.pop %v842
    %v850 = vmul.f32 %v848, %v763
    %852 = vrot.lane.b32.xlu0 %v849, 64
    %v853 = vpop.permute.xlu0 %852
    %v855 = vmul.f32 %v848, %v853
    %857 = vrot.lane.b32.xlu0 %v855, 32
    %v858 = vpop.permute.xlu0 %857
    %v860 = vadd.f32 %v850, %v858
    %v861 = vtanh.pop %v860
    %863 = vrot.lane.b32.xlu0 %v861, 64
    %v864 = vpop.permute.xlu0 %863
    %v866 = vmul.f32 %v848, %v864
    %vm867 = vcmp.gt.f32.partialorder %v217, 5.0
    %v868 = vsel %vm867, 1, 0
    %869 = vset.pattern.permute.xlu0 0
    %870 = vperm.xlu0 %869, %v868
    %v871 = vpop.permute.xlu0 %870
    %vm872 = vcmp.eq.s32.totalorder %v871, 1
    %v873 = vsel %vm872, %v860, %v763
    %v874 = vsel %vm872, %v866, %v764
    %s875 = scalar_lea.vmem [#allocation2], 6
    %v876 = vld [vmem:[%s875] ss:$8 sm:$0x3]
    %878 = vrot.lane.b32.xlu0 %v874, 32
    %v879 = vpop.permute.xlu0 %878
    %v880 = vsel %vm44, %v879, 0
    %882 = vmatprep.subr.mxu0 0.0
    %883 = vmatpush1.msra.mxu0 %v213
    %884 = vmatprep.subr.mxu0 0.0
    %885 = vmatpush1.msra.mxu0 %v214
    %886 = vmatprep.subr.mxu0 0.0
    %887 = vmatpush1.msra.mxu0 %v215
    %888 = vmatprep.subr.mxu0 0.0
    %889 = vmatpush1.msra.mxu0 %v216
    %890 = vmatprep.subr.mxu0 0.0
    %891 = vmatpush1.msra.mxu0 0.0
    %892 = vmatprep.subr.mxu0 0.0
    %893 = vmatpush1.msra.mxu0 0.0
    %894 = vmatprep.subr.mxu0 0.0
    %895 = vmatpush1.msra.mxu0 0.0
    %896 = vmatprep.subr.mxu0 0.0
    %897 = vmatpush1.msra.mxu0 0.0
    %898 = vmatprep.subr.mxu0 0.0
    %899 = vmatpush1.msra.mxu0 0.0
    %900 = vmatprep.subr.mxu0 0.0
    %901 = vmatpush1.msra.mxu0 0.0
    %902 = vmatprep.subr.mxu0 0.0
    %903 = vmatpush1.msra.mxu0 0.0
    %904 = vmatprep.subr.mxu0 0.0
    %905 = vmatpush1.msra.mxu0 0.0
    %906 = vmatprep.subr.mxu0 0.0
    %907 = vmatpush1.msra.mxu0 0.0
    %908 = vmatprep.subr.mxu0 0.0
    %909 = vmatpush1.msra.mxu0 0.0
    %910 = vmatprep.subr.mxu0 0.0
    %911 = vmatpush1.msra.mxu0 0.0
    %912 = vmatprep.subr.mxu0 0.0
    %913 = vmatpush1.msra.mxu0 0.0
    %914 = vmatprep.subr.mxu0 0.0
    %915 = vmatpush1.msra.mxu0 0.0
    %916 = vmatprep.subr.mxu0 0.0
    %917 = vmatpush1.msra.mxu0 0.0
    %918 = vmatprep.subr.mxu0 0.0
    %919 = vmatpush1.msra.mxu0 0.0
    %920 = vmatprep.subr.mxu0 0.0
    %921 = vmatpush1.msra.mxu0 0.0
    %922 = vmatprep.subr.mxu0 0.0
    %923 = vmatpush1.msra.mxu0 0.0
    %924 = vmatprep.subr.mxu0 0.0
    %925 = vmatpush1.msra.mxu0 0.0
    %926 = vmatprep.subr.mxu0 0.0
    %927 = vmatpush1.msra.mxu0 0.0
    %928 = vmatprep.subr.mxu0 0.0
    %929 = vmatpush1.msra.mxu0 0.0
    %930 = vmatprep.subr.mxu0 0.0
    %931 = vmatpush1.msra.mxu0 0.0
    %932 = vmatprep.subr.mxu0 0.0
    %933 = vmatpush1.msra.mxu0 0.0
    %934 = vmatprep.subr.mxu0 0.0
    %935 = vmatpush1.msra.mxu0 0.0
    %936 = vmatprep.subr.mxu0 0.0
    %937 = vmatpush1.msra.mxu0 0.0
    %938 = vmatprep.subr.mxu0 0.0
    %939 = vmatpush1.msra.mxu0 0.0
    %940 = vmatprep.subr.mxu0 0.0
    %941 = vmatpush1.msra.mxu0 0.0
    %942 = vmatprep.subr.mxu0 0.0
    %943 = vmatpush1.msra.mxu0 0.0
    %944 = vmatprep.subr.mxu0 0.0
    %945 = vmatpush1.msra.mxu0 0.0
    %946 = vmatprep.mubr.f32.mxu0 0.0
    %947 = vmatmul.mubr.f32.gmra.mrb[0].mxu0 %v880
    %v948 = vpop.f32.mrb[0].mxu0
    %v949 = vadd.f32 0.0, %v948
    %v950 = vpop.f32.mrb[0].mxu0
    %951 = vdwg.mxu0
    %v952 = vadd.f32 %v876, %v949
    %v953 = vxor.u32 %v952, 2147483648
    %v954 = vmul.f32 %v953, 1.442695
    %v955 = vpow.pop %v954
    %v956 = vadd.f32 %v955, 1.0
    %v957 = vrcp.pop %v956
    %v958 = vmul.f32 1.0, %v957
    %v959 = vtanh.pop %v952
    %v960 = vmul.f32 %v958, %v873
    %962 = vrot.lane.b32.xlu0 %v959, 64
    %v963 = vpop.permute.xlu0 %962
    %v965 = vmul.f32 %v958, %v963
    %967 = vrot.lane.b32.xlu0 %v965, 32
    %v968 = vpop.permute.xlu0 %967
    %v970 = vadd.f32 %v960, %v968
    %v971 = vtanh.pop %v970
    %973 = vrot.lane.b32.xlu0 %v971, 64
    %v974 = vpop.permute.xlu0 %973
    %v976 = vmul.f32 %v958, %v974
    %vm977 = vcmp.gt.f32.partialorder %v217, 6.0
    %v978 = vsel %vm977, 1, 0
    %979 = vset.pattern.permute.xlu0 0
    %980 = vperm.xlu0 %979, %v978
    %v981 = vpop.permute.xlu0 %980
    %vm982 = vcmp.eq.s32.totalorder %v981, 1
    %v983 = vsel %vm982, %v970, %v873
    %v984 = vsel %vm982, %v976, %v874
    %s985 = scalar_lea.vmem [#allocation2], 7
    %v986 = vld [vmem:[%s985] ss:$8 sm:$0x3]
    %988 = vrot.lane.b32.xlu0 %v984, 32
    %v989 = vpop.permute.xlu0 %988
    %v990 = vsel %vm44, %v989, 0
    %992 = vmatprep.subr.mxu0 0.0
    %993 = vmatpush1.msra.mxu0 %v213
    %994 = vmatprep.subr.mxu0 0.0
    %995 = vmatpush1.msra.mxu0 %v214
    %996 = vmatprep.subr.mxu0 0.0
    %997 = vmatpush1.msra.mxu0 %v215
    %998 = vmatprep.subr.mxu0 0.0
    %999 = vmatpush1.msra.mxu0 %v216
    %1000 = vmatprep.subr.mxu0 0.0
    %1001 = vmatpush1.msra.mxu0 0.0
    %1002 = vmatprep.subr.mxu0 0.0
    %1003 = vmatpush1.msra.mxu0 0.0
    %1004 = vmatprep.subr.mxu0 0.0
    %1005 = vmatpush1.msra.mxu0 0.0
    %1006 = vmatprep.subr.mxu0 0.0
    %1007 = vmatpush1.msra.mxu0 0.0
    %1008 = vmatprep.subr.mxu0 0.0
    %1009 = vmatpush1.msra.mxu0 0.0
    %1010 = vmatprep.subr.mxu0 0.0
    %1011 = vmatpush1.msra.mxu0 0.0
    %1012 = vmatprep.subr.mxu0 0.0
    %1013 = vmatpush1.msra.mxu0 0.0
    %1014 = vmatprep.subr.mxu0 0.0
    %1015 = vmatpush1.msra.mxu0 0.0
    %1016 = vmatprep.subr.mxu0 0.0
    %1017 = vmatpush1.msra.mxu0 0.0
    %1018 = vmatprep.subr.mxu0 0.0
    %1019 = vmatpush1.msra.mxu0 0.0
    %1020 = vmatprep.subr.mxu0 0.0
    %1021 = vmatpush1.msra.mxu0 0.0
    %1022 = vmatprep.subr.mxu0 0.0
    %1023 = vmatpush1.msra.mxu0 0.0
    %1024 = vmatprep.subr.mxu0 0.0
    %1025 = vmatpush1.msra.mxu0 0.0
    %1026 = vmatprep.subr.mxu0 0.0
    %1027 = vmatpush1.msra.mxu0 0.0
    %1028 = vmatprep.subr.mxu0 0.0
    %1029 = vmatpush1.msra.mxu0 0.0
    %1030 = vmatprep.subr.mxu0 0.0
    %1031 = vmatpush1.msra.mxu0 0.0
    %1032 = vmatprep.subr.mxu0 0.0
    %1033 = vmatpush1.msra.mxu0 0.0
    %1034 = vmatprep.subr.mxu0 0.0
    %1035 = vmatpush1.msra.mxu0 0.0
    %1036 = vmatprep.subr.mxu0 0.0
    %1037 = vmatpush1.msra.mxu0 0.0
    %1038 = vmatprep.subr.mxu0 0.0
    %1039 = vmatpush1.msra.mxu0 0.0
    %1040 = vmatprep.subr.mxu0 0.0
    %1041 = vmatpush1.msra.mxu0 0.0
    %1042 = vmatprep.subr.mxu0 0.0
    %1043 = vmatpush1.msra.mxu0 0.0
    %1044 = vmatprep.subr.mxu0 0.0
    %1045 = vmatpush1.msra.mxu0 0.0
    %1046 = vmatprep.subr.mxu0 0.0
    %1047 = vmatpush1.msra.mxu0 0.0
    %1048 = vmatprep.subr.mxu0 0.0
    %1049 = vmatpush1.msra.mxu0 0.0
    %1050 = vmatprep.subr.mxu0 0.0
    %1051 = vmatpush1.msra.mxu0 0.0
    %1052 = vmatprep.subr.mxu0 0.0
    %1053 = vmatpush1.msra.mxu0 0.0
    %1054 = vmatprep.subr.mxu0 0.0
    %1055 = vmatpush1.msra.mxu0 0.0
    %1056 = vmatprep.mubr.f32.mxu0 0.0
    %1057 = vmatmul.mubr.f32.gmra.mrb[0].mxu0 %v990
    %v1058 = vpop.f32.mrb[0].mxu0
    %v1059 = vadd.f32 0.0, %v1058
    %v1060 = vpop.f32.mrb[0].mxu0
    %1061 = vdwg.mxu0
    %v1062 = vadd.f32 %v986, %v1059
    %v1063 = vxor.u32 %v1062, 2147483648
    %v1064 = vmul.f32 %v1063, 1.442695
    %v1065 = vpow.pop %v1064
    %v1066 = vadd.f32 %v1065, 1.0
    %v1067 = vrcp.pop %v1066
    %v1068 = vmul.f32 1.0, %v1067
    %v1069 = vtanh.pop %v1062
    %v1070 = vmul.f32 %v1068, %v983
    %1072 = vrot.lane.b32.xlu0 %v1069, 64
    %v1073 = vpop.permute.xlu0 %1072
    %v1075 = vmul.f32 %v1068, %v1073
    %1077 = vrot.lane.b32.xlu0 %v1075, 32
    %v1078 = vpop.permute.xlu0 %1077
    %v1080 = vadd.f32 %v1070, %v1078
    %v1081 = vtanh.pop %v1080
    %1083 = vrot.lane.b32.xlu0 %v1081, 64
    %v1084 = vpop.permute.xlu0 %1083
    %v1086 = vmul.f32 %v1068, %v1084
    %vm1087 = vcmp.gt.f32.partialorder %v217, 7.0
    %v1088 = vsel %vm1087, 1, 0
    %1089 = vset.pattern.permute.xlu0 0
    %1090 = vperm.xlu0 %1089, %v1088
    %v1091 = vpop.permute.xlu0 %1090
    %vm1092 = vcmp.eq.s32.totalorder %v1091, 1
    %v1093 = vsel %vm1092, %v1086, %v984
    %v1094 = vld [vmem:[#allocation3 + $0x58] sm:$0xff]
    %v1095 = vld [vmem:[#allocation3 + $0x60] sm:$0xff]
    %v1096 = vld [vmem:[#allocation3 + $0x68] sm:$0xff]
    %v1097 = vld [vmem:[#allocation3 + $0x70] sm:$0xff]
    %v1098 = vld [vmem:[%s4 + $0x2] sm:$0x1]
    %v1099 = vlaneseq
    %v1100 = vshrl.u32 %v1099, 7
    %v1101 = vsub.s32 0, %v1100
    %v1102 = vrot.slane %v1098, %v1101
    %1104 = vrot.lane.b32.xlu0 %v1093, 32
    %v1105 = vpop.permute.xlu0 %1104
    %v1106 = vsel %vm44, %v1105, 0
    %1108 = vmatprep.subr.mxu0 0.0
    %1109 = vmatpush1.msra.mxu0 %v1094
    %1110 = vmatprep.subr.mxu0 0.0
    %1111 = vmatpush1.msra.mxu0 %v1095
    %1112 = vmatprep.subr.mxu0 0.0
    %1113 = vmatpush1.msra.mxu0 %v1096
    %1114 = vmatprep.subr.mxu0 0.0
    %1115 = vmatpush1.msra.mxu0 %v1097
    %1116 = vmatprep.subr.mxu0 0.0
    %1117 = vmatpush1.msra.mxu0 0.0
    %1118 = vmatprep.subr.mxu0 0.0
    %1119 = vmatpush1.msra.mxu0 0.0
    %1120 = vmatprep.subr.mxu0 0.0
    %1121 = vmatpush1.msra.mxu0 0.0
    %1122 = vmatprep.subr.mxu0 0.0
    %1123 = vmatpush1.msra.mxu0 0.0
    %1124 = vmatprep.subr.mxu0 0.0
    %1125 = vmatpush1.msra.mxu0 0.0
    %1126 = vmatprep.subr.mxu0 0.0
    %1127 = vmatpush1.msra.mxu0 0.0
    %1128 = vmatprep.subr.mxu0 0.0
    %1129 = vmatpush1.msra.mxu0 0.0
    %1130 = vmatprep.subr.mxu0 0.0
    %1131 = vmatpush1.msra.mxu0 0.0
    %1132 = vmatprep.subr.mxu0 0.0
    %1133 = vmatpush1.msra.mxu0 0.0
    %1134 = vmatprep.subr.mxu0 0.0
    %1135 = vmatpush1.msra.mxu0 0.0
    %1136 = vmatprep.subr.mxu0 0.0
    %1137 = vmatpush1.msra.mxu0 0.0
    %1138 = vmatprep.subr.mxu0 0.0
    %1139 = vmatpush1.msra.mxu0 0.0
    %1140 = vmatprep.subr.mxu0 0.0
    %1141 = vmatpush1.msra.mxu0 0.0
    %1142 = vmatprep.subr.mxu0 0.0
    %1143 = vmatpush1.msra.mxu0 0.0
    %1144 = vmatprep.subr.mxu0 0.0
    %1145 = vmatpush1.msra.mxu0 0.0
    %1146 = vmatprep.subr.mxu0 0.0
    %1147 = vmatpush1.msra.mxu0 0.0
    %1148 = vmatprep.subr.mxu0 0.0
    %1149 = vmatpush1.msra.mxu0 0.0
    %1150 = vmatprep.subr.mxu0 0.0
    %1151 = vmatpush1.msra.mxu0 0.0
    %1152 = vmatprep.subr.mxu0 0.0
    %1153 = vmatpush1.msra.mxu0 0.0
    %1154 = vmatprep.subr.mxu0 0.0
    %1155 = vmatpush1.msra.mxu0 0.0
    %1156 = vmatprep.subr.mxu0 0.0
    %1157 = vmatpush1.msra.mxu0 0.0
    %1158 = vmatprep.subr.mxu0 0.0
    %1159 = vmatpush1.msra.mxu0 0.0
    %1160 = vmatprep.subr.mxu0 0.0
    %1161 = vmatpush1.msra.mxu0 0.0
    %1162 = vmatprep.subr.mxu0 0.0
    %1163 = vmatpush1.msra.mxu0 0.0
    %1164 = vmatprep.subr.mxu0 0.0
    %1165 = vmatpush1.msra.mxu0 0.0
    %1166 = vmatprep.subr.mxu0 0.0
    %1167 = vmatpush1.msra.mxu0 0.0
    %1168 = vmatprep.subr.mxu0 0.0
    %1169 = vmatpush1.msra.mxu0 0.0
    %1170 = vmatprep.subr.mxu0 0.0
    %1171 = vmatpush1.msra.mxu0 0.0
    %1172 = vmatprep.mubr.f32.mxu0 0.0
    %1173 = vmatmul.mubr.f32.gmra.mrb[0].mxu0 %v1106
    %v1174 = vpop.f32.mrb[0].mxu0
    %v1175 = vadd.f32 %v1102, %v1174
    %v1176 = vpop.f32.mrb[0].mxu0
    %1177 = vdwg.mxu0
    %v1178 = vmax.f32 %v1175, 0.0
    %v1179 = vld [vmem:[#allocation3 + $0x78] sm:$0xff]
    %v1180 = vld [vmem:[#allocation3 + $0x80] sm:$0xff]
    %v1181 = vld [vmem:[#allocation3 + $0x88] sm:$0xff]
    %v1182 = vld [vmem:[#allocation3 + $0x90] sm:$0xff]
    %vm1183 = vcmask 130048
    %v1185 = vsel %vm1183, %v1178, 0
    %1187 = vmatprep.subr.mxu0 0.0
    %1188 = vmatpush1.msra.mxu0 %v1181
    %1189 = vmatprep.subr.mxu0 0.0
    %1190 = vmatpush1.msra.mxu0 %v1182
    %1191 = vmatprep.subr.mxu0 0.0
    %1192 = vmatpush1.msra.mxu0 0.0
    %1193 = vmatprep.subr.mxu0 0.0
    %1194 = vmatpush1.msra.mxu0 0.0
    %1195 = vmatprep.subr.mxu0 0.0
    %1196 = vmatpush1.msra.mxu0 0.0
    %1197 = vmatprep.subr.mxu0 0.0
    %1198 = vmatpush1.msra.mxu0 0.0
    %1199 = vmatprep.subr.mxu0 0.0
    %1200 = vmatpush1.msra.mxu0 0.0
    %1201 = vmatprep.subr.mxu0 0.0
    %1202 = vmatpush1.msra.mxu0 0.0
    %1203 = vmatprep.subr.mxu0 0.0
    %1204 = vmatpush1.msra.mxu0 0.0
    %1205 = vmatprep.subr.mxu0 0.0
    %1206 = vmatpush1.msra.mxu0 0.0
    %1207 = vmatprep.subr.mxu0 0.0
    %1208 = vmatpush1.msra.mxu0 0.0
    %1209 = vmatprep.subr.mxu0 0.0
    %1210 = vmatpush1.msra.mxu0 0.0
    %1211 = vmatprep.subr.mxu0 0.0
    %1212 = vmatpush1.msra.mxu0 0.0
    %1213 = vmatprep.subr.mxu0 0.0
    %1214 = vmatpush1.msra.mxu0 0.0
    %1215 = vmatprep.subr.mxu0 0.0
    %1216 = vmatpush1.msra.mxu0 0.0
    %1217 = vmatprep.subr.mxu0 0.0
    %1218 = vmatpush1.msra.mxu0 0.0
    %1219 = vmatprep.subr.mxu0 0.0
    %1220 = vmatpush1.msra.mxu0 0.0
    %1221 = vmatprep.subr.mxu0 0.0
    %1222 = vmatpush1.msra.mxu0 0.0
    %1223 = vmatprep.subr.mxu0 0.0
    %1224 = vmatpush1.msra.mxu0 0.0
    %1225 = vmatprep.subr.mxu0 0.0
    %1226 = vmatpush1.msra.mxu0 0.0
    %1227 = vmatprep.subr.mxu0 0.0
    %1228 = vmatpush1.msra.mxu0 0.0
    %1229 = vmatprep.subr.mxu0 0.0
    %1230 = vmatpush1.msra.mxu0 0.0
    %1231 = vmatprep.subr.mxu0 0.0
    %1232 = vmatpush1.msra.mxu0 0.0
    %1233 = vmatprep.subr.mxu0 0.0
    %1234 = vmatpush1.msra.mxu0 0.0
    %1235 = vmatprep.subr.mxu0 0.0
    %1236 = vmatpush1.msra.mxu0 0.0
    %1237 = vmatprep.subr.mxu0 0.0
    %1238 = vmatpush1.msra.mxu0 0.0
    %1239 = vmatprep.subr.mxu0 0.0
    %1240 = vmatpush1.msra.mxu0 0.0
    %1241 = vmatprep.subr.mxu0 0.0
    %1242 = vmatpush1.msra.mxu0 0.0
    %1243 = vmatprep.subr.mxu0 0.0
    %1244 = vmatpush1.msra.mxu0 0.0
    %1245 = vmatprep.subr.mxu0 0.0
    %1246 = vmatpush1.msra.mxu0 0.0
    %1247 = vmatprep.subr.mxu0 0.0
    %1248 = vmatpush1.msra.mxu0 0.0
    %1249 = vmatprep.subr.mxu0 0.0
    %1250 = vmatpush1.msra.mxu0 0.0
    %1251 = vmatprep.mubr.f32.mxu0 0.0
    %1252 = vmatmul.mubr.f32.gmra.mrb[0].mxu0 %v1185
    %v1253 = vpop.f32.mrb[0].mxu0
    %v1254 = vadd.f32 0.0, %v1253
    %v1255 = vpop.f32.mrb[0].mxu0
    %1256 = vdwg.mxu0
    %v1258 = vsel %vm1183, %v118, 0
    %1260 = vmatprep.subr.mxu0 0.0
    %1261 = vmatpush1.msra.mxu0 %v1179
    %1262 = vmatprep.subr.mxu0 0.0
    %1263 = vmatpush1.msra.mxu0 %v1180
    %1264 = vmatprep.subr.mxu0 0.0
    %1265 = vmatpush1.msra.mxu0 0.0
    %1266 = vmatprep.subr.mxu0 0.0
    %1267 = vmatpush1.msra.mxu0 0.0
    %1268 = vmatprep.subr.mxu0 0.0
    %1269 = vmatpush1.msra.mxu0 0.0
    %1270 = vmatprep.subr.mxu0 0.0
    %1271 = vmatpush1.msra.mxu0 0.0
    %1272 = vmatprep.subr.mxu0 0.0
    %1273 = vmatpush1.msra.mxu0 0.0
    %1274 = vmatprep.subr.mxu0 0.0
    %1275 = vmatpush1.msra.mxu0 0.0
    %1276 = vmatprep.subr.mxu0 0.0
    %1277 = vmatpush1.msra.mxu0 0.0
    %1278 = vmatprep.subr.mxu0 0.0
    %1279 = vmatpush1.msra.mxu0 0.0
    %1280 = vmatprep.subr.mxu0 0.0
    %1281 = vmatpush1.msra.mxu0 0.0
    %1282 = vmatprep.subr.mxu0 0.0
    %1283 = vmatpush1.msra.mxu0 0.0
    %1284 = vmatprep.subr.mxu0 0.0
    %1285 = vmatpush1.msra.mxu0 0.0
    %1286 = vmatprep.subr.mxu0 0.0
    %1287 = vmatpush1.msra.mxu0 0.0
    %1288 = vmatprep.subr.mxu0 0.0
    %1289 = vmatpush1.msra.mxu0 0.0
    %1290 = vmatprep.subr.mxu0 0.0
    %1291 = vmatpush1.msra.mxu0 0.0
    %1292 = vmatprep.subr.mxu0 0.0
    %1293 = vmatpush1.msra.mxu0 0.0
    %1294 = vmatprep.subr.mxu0 0.0
    %1295 = vmatpush1.msra.mxu0 0.0
    %1296 = vmatprep.subr.mxu0 0.0
    %1297 = vmatpush1.msra.mxu0 0.0
    %1298 = vmatprep.subr.mxu0 0.0
    %1299 = vmatpush1.msra.mxu0 0.0
    %1300 = vmatprep.subr.mxu0 0.0
    %1301 = vmatpush1.msra.mxu0 0.0
    %1302 = vmatprep.subr.mxu0 0.0
    %1303 = vmatpush1.msra.mxu0 0.0
    %1304 = vmatprep.subr.mxu0 0.0
    %1305 = vmatpush1.msra.mxu0 0.0
    %1306 = vmatprep.subr.mxu0 0.0
    %1307 = vmatpush1.msra.mxu0 0.0
    %1308 = vmatprep.subr.mxu0 0.0
    %1309 = vmatpush1.msra.mxu0 0.0
    %1310 = vmatprep.subr.mxu0 0.0
    %1311 = vmatpush1.msra.mxu0 0.0
    %1312 = vmatprep.subr.mxu0 0.0
    %1313 = vmatpush1.msra.mxu0 0.0
    %1314 = vmatprep.subr.mxu0 0.0
    %1315 = vmatpush1.msra.mxu0 0.0
    %1316 = vmatprep.subr.mxu0 0.0
    %1317 = vmatpush1.msra.mxu0 0.0
    %1318 = vmatprep.subr.mxu0 0.0
    %1319 = vmatpush1.msra.mxu0 0.0
    %1320 = vmatprep.subr.mxu0 0.0
    %1321 = vmatpush1.msra.mxu0 0.0
    %1322 = vmatprep.subr.mxu0 0.0
    %1323 = vmatpush1.msra.mxu0 0.0
    %1324 = vmatprep.mubr.f32.mxu0 0.0
    %1325 = vmatmul.mubr.f32.gmra.mrb[0].mxu0 %v1258
    %v1326 = vpop.f32.mrb[0].mxu0
    %v1327 = vadd.f32 %v1254, %v1326
    %v1328 = vpop.f32.mrb[0].mxu0
    %1329 = vdwg.mxu0
    %v1330 = vld [vmem:[%s4 + $0x3] sm:$0x1]
    %v1331 = vlaneseq
    %v1332 = vshrl.u32 %v1331, 7
    %v1333 = vsub.s32 0, %v1332
    %v1334 = vrot.slane %v1330, %v1333
    %v1335 = vadd.f32 %v1327, %v1334
    %v1336 = vmax.f32 %v1335, 0.0
    %v1337 = vld [vmem:[#allocation3 + $0x98] sm:$0xff]
    %v1338 = vld [vmem:[#allocation3 + $0xa0] sm:$0xff]
    %v1339 = vld [vmem:[#allocation3 + $0xa8] sm:$0xff]
    %v1340 = vld [vmem:[#allocation3 + $0xb0] sm:$0xff]
    %v1341 = vld [vmem:[%s4 + $0x4] sm:$0x1]
    %v1342 = vlaneseq
    %v1343 = vshrl.u32 %v1342, 7
    %v1344 = vsub.s32 0, %v1343
    %v1345 = vrot.slane %v1341, %v1344
    %v1347 = vsel %vm44, %v1336, 0
    %1349 = vmatprep.subr.mxu0 0.0
    %1350 = vmatpush1.msra.mxu0 %v1337
    %1351 = vmatprep.subr.mxu0 0.0
    %1352 = vmatpush1.msra.mxu0 %v1338
    %1353 = vmatprep.subr.mxu0 0.0
    %1354 = vmatpush1.msra.mxu0 %v1339
    %1355 = vmatprep.subr.mxu0 0.0
    %1356 = vmatpush1.msra.mxu0 %v1340
    %1357 = vmatprep.subr.mxu0 0.0
    %1358 = vmatpush1.msra.mxu0 0.0
    %1359 = vmatprep.subr.mxu0 0.0
    %1360 = vmatpush1.msra.mxu0 0.0
    %1361 = vmatprep.subr.mxu0 0.0
    %1362 = vmatpush1.msra.mxu0 0.0
    %1363 = vmatprep.subr.mxu0 0.0
    %1364 = vmatpush1.msra.mxu0 0.0
    %1365 = vmatprep.subr.mxu0 0.0
    %1366 = vmatpush1.msra.mxu0 0.0
    %1367 = vmatprep.subr.mxu0 0.0
    %1368 = vmatpush1.msra.mxu0 0.0
    %1369 = vmatprep.subr.mxu0 0.0
    %1370 = vmatpush1.msra.mxu0 0.0
    %1371 = vmatprep.subr.mxu0 0.0
    %1372 = vmatpush1.msra.mxu0 0.0
    %1373 = vmatprep.subr.mxu0 0.0
    %1374 = vmatpush1.msra.mxu0 0.0
    %1375 = vmatprep.subr.mxu0 0.0
    %1376 = vmatpush1.msra.mxu0 0.0
    %1377 = vmatprep.subr.mxu0 0.0
    %1378 = vmatpush1.msra.mxu0 0.0
    %1379 = vmatprep.subr.mxu0 0.0
    %1380 = vmatpush1.msra.mxu0 0.0
    %1381 = vmatprep.subr.mxu0 0.0
    %1382 = vmatpush1.msra.mxu0 0.0
    %1383 = vmatprep.subr.mxu0 0.0
    %1384 = vmatpush1.msra.mxu0 0.0
    %1385 = vmatprep.subr.mxu0 0.0
    %1386 = vmatpush1.msra.mxu0 0.0
    %1387 = vmatprep.subr.mxu0 0.0
    %1388 = vmatpush1.msra.mxu0 0.0
    %1389 = vmatprep.subr.mxu0 0.0
    %1390 = vmatpush1.msra.mxu0 0.0
    %1391 = vmatprep.subr.mxu0 0.0
    %1392 = vmatpush1.msra.mxu0 0.0
    %1393 = vmatprep.subr.mxu0 0.0
    %1394 = vmatpush1.msra.mxu0 0.0
    %1395 = vmatprep.subr.mxu0 0.0
    %1396 = vmatpush1.msra.mxu0 0.0
    %1397 = vmatprep.subr.mxu0 0.0
    %1398 = vmatpush1.msra.mxu0 0.0
    %1399 = vmatprep.subr.mxu0 0.0
    %1400 = vmatpush1.msra.mxu0 0.0
    %1401 = vmatprep.subr.mxu0 0.0
    %1402 = vmatpush1.msra.mxu0 0.0
    %1403 = vmatprep.subr.mxu0 0.0
    %1404 = vmatpush1.msra.mxu0 0.0
    %1405 = vmatprep.subr.mxu0 0.0
    %1406 = vmatpush1.msra.mxu0 0.0
    %1407 = vmatprep.subr.mxu0 0.0
    %1408 = vmatpush1.msra.mxu0 0.0
    %1409 = vmatprep.subr.mxu0 0.0
    %1410 = vmatpush1.msra.mxu0 0.0
    %1411 = vmatprep.subr.mxu0 0.0
    %1412 = vmatpush1.msra.mxu0 0.0
    %1413 = vmatprep.mubr.f32.mxu0 0.0
    %1414 = vmatmul.mubr.f32.gmra.mrb[0].mxu0 %v1347
    %v1415 = vpop.f32.mrb[0].mxu0
    %v1416 = vadd.f32 %v1345, %v1415
    %v1417 = vpop.f32.mrb[0].mxu0
    %1418 = vdwg.mxu0
    %1419 = vst [vmem:[%s5] sm:$0x3] 0.0
    %vm1420 = vcmask 254976
    %1421 = vst.msk [vmem:[%s5] sm:$0x3] %vm1420, %v1336
    %1423 = vrot.lane.b32.xlu0 %v1416, 32
    %v1424 = vpop.permute.xlu0 %1423
    %vm1426 = vcmask 288000
    %1427 = vst.msk [vmem:[%s5] sm:$0x3] %vm1426, %v1424
    // Predicated region
    $region26: #{ef_model_al_forward.1} parent=1 // pred_check
      _
    $region27: #{ef_model_al_forward.1} parent=1 // pred_check_branch
      %1429 = sbr.rel (0) target = $region29
    $region28: #{ef_model_al_forward.1} parent=1 // pred_region
      _
    $region29: #{ef_model_al_forward.1} parent=1 // pred_fallthru
      _
    // Predicated region
    $region30: #{ef_model_al_forward.1} parent=1 // pred_check
      _
    $region31: #{ef_model_al_forward.1} parent=1 // pred_check_branch
      %1431 = sbr.rel (0) target = $region33
    $region32: #{ef_model_al_forward.1} parent=1 // pred_region
      _
    $region33: #{ef_model_al_forward.1} parent=1 // pred_fallthru
      _
    %1432 = vsyncpa [#allocation4], 1

</llo_original>
